<compile_context>
chip_gen: v7x
topology: tpu7x:2x2x1
jax: 0.10.0
libtpu: 0.0.40
codegen_flags: <defaults>
</compile_context>

<pallas_src>
import functools

import jax
import jax.numpy as jnp
from jax.experimental import pallas as pl
from jax.experimental.pallas import tpu as pltpu


def _round_up(x, m):
    return ((x + m - 1) // m) * m


# ---------------------------------------------------------------------------
# Fused kernel: one grid step per batch element
# ---------------------------------------------------------------------------
def _fused_attention_kernel(
    x_ref,        # (1, C, HW)   input, channels in sublanes, pixels in lanes
    wqkv_ref,     # (3C, C)      qkv 1x1 conv weight (torch layout, used as-is)
    bqkv_ref,     # (3C, 1)
    wdw_ref,      # (3C, 9)      depthwise 3x3 taps, flattened row-major (ky*3+kx)
    bdw_ref,      # (3C, 1)
    temp_ref,     # (NH,) SMEM   per-head temperature
    wproj_ref,    # (C, C)       project_out 1x1 conv weight
    bproj_ref,    # (C, 1)
    o_ref,        # (1, C, HW)
    pad_ref,      # (3C, HW+2P)  VMEM scratch: zero-padded flattened qkv
    *, C, NH, H, W, P,
):
    f32 = jnp.float32
    HW = H * W
    C3 = 3 * C
    c_head = C // NH

    # ---- qkv 1x1 conv: (3C, C) @ (C, HW) -> lane-dense (3C, HW) ----
    x = x_ref[0]
    qkv = jnp.dot(wqkv_ref[...], x, preferred_element_type=f32) + bqkv_ref[...]

    # ---- depthwise 3x3 conv, padding=1, in flattened (3C, HW) layout ----
    # Zero-pad the flat pixel axis by P on each side; every tap is then a
    # static lane-shifted window of the scratch.  Rows that fall outside the
    # image land in the zero pad; only the left/right column wrap needs a mask.
    pad_ref[:, :P] = jnp.zeros((C3, P), f32)
    pad_ref[:, P + HW:] = jnp.zeros((C3, P), f32)
    pad_ref[:, P:P + HW] = qkv

    lane = jax.lax.broadcasted_iota(jnp.int32, (1, HW), 1)
    col = lane % W
    mask_left = col >= 1          # reading pixel (y+dy, x-1) is valid
    mask_right = col <= W - 2     # reading pixel (y+dy, x+1) is valid

    acc = jnp.zeros((C3, HW), f32)
    for dy in (-1, 0, 1):
        for dx in (-1, 0, 1):
            start = P + dy * W + dx
            tap = (dy + 1) * 3 + (dx + 1)
            shifted = pad_ref[:, start:start + HW]
            if dx == -1:
                shifted = jnp.where(mask_left, shifted, 0.0)
            elif dx == 1:
                shifted = jnp.where(mask_right, shifted, 0.0)
            acc = acc + shifted * wdw_ref[:, tap:tap + 1]
    qkv_dw = acc + bdw_ref[...]

    # ---- attention over all heads of this batch + fused project_out ----
    q = qkv_dw[0:C]
    k = qkv_dw[C:2 * C]
    v = qkv_dw[2 * C:3 * C]

    eps = 1e-12  # matches torch.nn.functional.normalize default eps

    def l2_normalize(a):  # per-row normalize over HW; rsqrt runs on the EUP
        ss = jnp.sum(a * a, axis=-1, keepdims=True)
        return a * jax.lax.rsqrt(jnp.maximum(ss, eps * eps))

    qn = l2_normalize(q)
    kn = l2_normalize(k)

    nt_dims = (((1,), (1,)), ((), ()))  # contract last dims: q @ k^T, no transpose
    y = jnp.zeros((C, HW), f32)
    for h in range(NH):
        sl = slice(h * c_head, (h + 1) * c_head)
        attn = jax.lax.dot_general(qn[sl], kn[sl], nt_dims,
                                   preferred_element_type=f32) * temp_ref[h]
        attn = attn - jnp.max(attn, axis=-1, keepdims=True)
        e = jnp.exp(attn)
        s = jnp.sum(e, axis=-1, keepdims=True)
        r = pl.reciprocal(s, approx=True)   # EUP reciprocal
        r = r * (2.0 - s * r)               # one Newton step -> ~f32 accuracy
        p = e * r
        out_h = jnp.dot(p, v[sl], preferred_element_type=f32)          # (c_head, HW)
        # project_out fused: accumulate W_proj[:, head-columns] @ out_head
        y = y + jnp.dot(wproj_ref[:, sl], out_h, preferred_element_type=f32)

    o_ref[0] = y + bproj_ref[...]


# ---------------------------------------------------------------------------
# Host wrapper (only free reshapes of weights / activations — no transposes)
# ---------------------------------------------------------------------------
def attention_forward(x, params, num_heads):
    B, C, H, W = x.shape
    HW = H * W
    C3 = 3 * C
    P = _round_up(W + 1, 128)   # lane-aligned zero-pad width of the flat buffer

    x_flat = x.reshape(B, C, HW)                            # free (NCHW contiguous)
    w_qkv = params["w_qkv"][:, :, 0, 0]                     # (3C, C)
    b_qkv = params["b_qkv"].reshape(C3, 1)
    w_dw = params["w_dw"][:, 0].reshape(C3, 9)              # (3C, 9)
    b_dw = params["b_dw"].reshape(C3, 1)
    w_proj = params["w_proj"][:, :, 0, 0]                   # (C, C)
    b_proj = params["b_proj"].reshape(C, 1)
    temperature = params["temperature"].reshape(num_heads).astype(jnp.float32)

    kernel = functools.partial(_fused_attention_kernel,
                               C=C, NH=num_heads, H=H, W=W, P=P)
    rep = lambda b: (0, 0)   # weights: same (full) block every grid step

    out = pl.pallas_call(
        kernel,
        out_shape=jax.ShapeDtypeStruct((B, C, HW), jnp.float32),
        grid=(B,),
        in_specs=[
            pl.BlockSpec((1, C, HW), lambda b: (b, 0, 0)),   # x
            pl.BlockSpec((C3, C), rep),                      # w_qkv
            pl.BlockSpec((C3, 1), rep),                      # b_qkv
            pl.BlockSpec((C3, 9), rep),                      # w_dw
            pl.BlockSpec((C3, 1), rep),                      # b_dw
            pl.BlockSpec(memory_space=pltpu.MemorySpace.SMEM),  # temperature
            pl.BlockSpec((C, C), rep),                       # w_proj
            pl.BlockSpec((C, 1), rep),                       # b_proj
        ],
        out_specs=pl.BlockSpec((1, C, HW), lambda b: (b, 0, 0)),
        scratch_shapes=[pltpu.VMEM((C3, HW + 2 * P), jnp.float32)],
        compiler_params=pltpu.CompilerParams(
            dimension_semantics=("parallel",)),
    )(x_flat, w_qkv, b_qkv, w_dw, b_dw, temperature, w_proj, b_proj)

    return out.reshape(B, C, H, W)


# ---------------------------------------------------------------------------
# Pure-JAX reference (mirrors the PyTorch forward) for correctness checking
# ---------------------------------------------------------------------------
def reference_forward(x, params, num_heads):
    B, C, H, W = x.shape
    w = params["w_qkv"][:, :, 0, 0]
    qkv = jnp.einsum("bchw,oc->bohw", x, w) + params["b_qkv"][None, :, None, None]
    xp = jnp.pad(qkv, ((0, 0), (0, 0), (1, 1), (1, 1)))
    wd = params["w_dw"][:, 0]
    out = jnp.zeros_like(qkv)
    for dy in range(3):
        for dx in range(3):
            out = out + xp[:, :, dy:dy + H, dx:dx + W] * wd[None, :, dy, dx, None, None]
    out = out + params["b_dw"][None, :, None, None]
    q, k, v = jnp.split(out, 3, axis=1)
    rh = lambda t: t.reshape(B, num_heads, C // num_heads, H * W)
    q, k, v = rh(q), rh(k), rh(v)
    qn = q / jnp.maximum(jnp.linalg.norm(q, axis=-1, keepdims=True), 1e-12)
    kn = k / jnp.maximum(jnp.linalg.norm(k, axis=-1, keepdims=True), 1e-12)
    attn = jnp.einsum("bhcd,bhed->bhce", qn, kn) * params["temperature"][None, :, None, None]
    attn = jax.nn.softmax(attn, axis=-1)
    o = jnp.einsum("bhce,bhed->bhcd", attn, v).reshape(B, C, H, W)
    wp = params["w_proj"][:, :, 0, 0]
    return jnp.einsum("bchw,oc->bohw", o, wp) + params["b_proj"][None, :, None, None]


if __name__ == "__main__":
    B, dim, H, W = 2, 16, 16, 16
    num_heads = 4  # c_head = 4

    key = jax.random.PRNGKey(0)
    ks = jax.random.split(key, 8)
    x = jax.random.normal(ks[0], (B, dim, H, W), jnp.float32)

    # Deterministic synthetic parameters (bias=True variant of the module).
    params = {
        "w_qkv": 0.2 * jax.random.normal(ks[1], (3 * dim, dim, 1, 1), jnp.float32),
        "b_qkv": 0.1 * jax.random.normal(ks[2], (3 * dim,), jnp.float32),
        "w_dw": 0.2 * jax.random.normal(ks[3], (3 * dim, 1, 3, 3), jnp.float32),
        "b_dw": 0.1 * jax.random.normal(ks[4], (3 * dim,), jnp.float32),
        # nn.Parameter(torch.ones(num_heads,1,1)) — stored flat, non-trivial values
        "temperature": jnp.linspace(0.5, 1.5, num_heads).astype(jnp.float32),
        "w_proj": 0.2 * jax.random.normal(ks[5], (dim, dim, 1, 1), jnp.float32),
        "b_proj": 0.1 * jax.random.normal(ks[6], (dim,), jnp.float32),
    }

    out = attention_forward(x, params, num_heads)
    out = jax.block_until_ready(out)

    ref = reference_forward(x, params, num_heads)
    assert out.shape == (B, dim, H, W), out.shape
    max_err = float(jnp.max(jnp.abs(out - ref)))
    assert jnp.allclose(out, ref, atol=1e-3, rtol=1e-3), max_err
    print("KERNEL_OK")
</pallas_src>

<mosaic_0001>
module attributes {stable_mosaic.version = 11 : i64} {
  func.func @_fused_attention_kernel(%arg0: i32, %arg1: memref<1x16x256xf32, #tpu.memory_space<vmem>>, %arg2: memref<48x16xf32, #tpu.memory_space<vmem>>, %arg3: memref<48x1xf32, #tpu.memory_space<vmem>>, %arg4: memref<48x9xf32, #tpu.memory_space<vmem>>, %arg5: memref<48x1xf32, #tpu.memory_space<vmem>>, %arg6: memref<4xf32, #tpu.memory_space<smem>>, %arg7: memref<16x16xf32, #tpu.memory_space<vmem>>, %arg8: memref<16x1xf32, #tpu.memory_space<vmem>>, %arg9: memref<1x16x256xf32, #tpu.memory_space<vmem>>, %arg10: memref<48x512xf32, #tpu.memory_space<vmem>>) attributes {dimension_semantics = [#tpu.dimension_semantics<parallel>], iteration_bounds = array<i64: 2>, scalar_prefetch = 0 : i64, scratch_operands = 1 : i64, tpu.core_type = #tpu.core_type<tc>, window_params = [{transform_indices = @transform_0, window_bounds = array<i64: 1, 16, 256>}, {pipeline_mode = #tpu.pipeline_mode<synchronous>, transform_indices = @transform_1, window_bounds = array<i64: 48, 16>}, {pipeline_mode = #tpu.pipeline_mode<synchronous>, transform_indices = @transform_2, window_bounds = array<i64: 48, 1>}, {pipeline_mode = #tpu.pipeline_mode<synchronous>, transform_indices = @transform_3, window_bounds = array<i64: 48, 9>}, {pipeline_mode = #tpu.pipeline_mode<synchronous>, transform_indices = @transform_4, window_bounds = array<i64: 48, 1>}, {transform_indices = @transform_5, window_bounds = array<i64: 4>}, {pipeline_mode = #tpu.pipeline_mode<synchronous>, transform_indices = @transform_6, window_bounds = array<i64: 16, 16>}, {pipeline_mode = #tpu.pipeline_mode<synchronous>, transform_indices = @transform_7, window_bounds = array<i64: 16, 1>}, {transform_indices = @transform_8, window_bounds = array<i64: 1, 16, 256>}]} {
    %c0 = arith.constant 0 : index
    %c0_0 = arith.constant 0 : index
    %c0_1 = arith.constant 0 : index
    %0 = vector.load %arg1[%c0, %c0_0, %c0_1] : memref<1x16x256xf32, #tpu.memory_space<vmem>>, vector<1x16x256xf32>
    %1 = vector.shape_cast %0 : vector<1x16x256xf32> to vector<16x256xf32>
    %c0_2 = arith.constant 0 : index
    %c0_3 = arith.constant 0 : index
    %2 = vector.load %arg2[%c0_2, %c0_3] : memref<48x16xf32, #tpu.memory_space<vmem>>, vector<48x16xf32>
    %cst = arith.constant dense<0.000000e+00> : vector<48x256xf32>
    %3 = tpu.matmul %2, %1, %cst {dimension_numbers = #tpu.dot_dimension_numbers<[1], [0], [0], [1], [0, 0, 1, 1], [], []>} : vector<48x16xf32>, vector<16x256xf32>, vector<48x256xf32> -> vector<48x256xf32>
    %c0_4 = arith.constant 0 : index
    %c0_5 = arith.constant 0 : index
    %4 = vector.load %arg3[%c0_4, %c0_5] : memref<48x1xf32, #tpu.memory_space<vmem>>, vector<48x1xf32>
    %5 = vector.broadcast %4 : vector<48x1xf32> to vector<48x256xf32>
    %6 = arith.addf %3, %5 : vector<48x256xf32>
    %cst_6 = arith.constant 0.000000e+00 : f32
    %7 = vector.broadcast %cst_6 : f32 to vector<48x128xf32>
    %c0_7 = arith.constant 0 : index
    %c0_8 = arith.constant 0 : index
    %8 = vector.load %arg10[%c0_7, %c0_8] : memref<48x512xf32, #tpu.memory_space<vmem>>, vector<48x128xf32>
    tpu.vector_store %arg10[%c0_7, %c0_8], %7 {strides = array<i32>} : memref<48x512xf32, #tpu.memory_space<vmem>>, vector<48x128xf32>,
    %cst_9 = arith.constant 0.000000e+00 : f32
    %9 = vector.broadcast %cst_9 : f32 to vector<48x128xf32>
    %c0_10 = arith.constant 0 : index
    %c384 = arith.constant 384 : index
    %10 = vector.load %arg10[%c0_10, %c384] : memref<48x512xf32, #tpu.memory_space<vmem>>, vector<48x128xf32>
    tpu.vector_store %arg10[%c0_10, %c384], %9 {strides = array<i32>} : memref<48x512xf32, #tpu.memory_space<vmem>>, vector<48x128xf32>,
    %c0_11 = arith.constant 0 : index
    %c128 = arith.constant 128 : index
    %11 = vector.load %arg10[%c0_11, %c128] : memref<48x512xf32, #tpu.memory_space<vmem>>, vector<48x256xf32>
    tpu.vector_store %arg10[%c0_11, %c128], %6 {strides = array<i32>} : memref<48x512xf32, #tpu.memory_space<vmem>>, vector<48x256xf32>,
    %12 = tpu.iota {dimensions = array<i32: 1>} : vector<1x256xi32>
    %c16_i32 = arith.constant 16 : i32
    %c0_i32 = arith.constant 0 : i32
    %13 = arith.cmpi eq, %c16_i32, %c0_i32 : i32
    %c1_i32 = arith.constant 1 : i32
    %14 = arith.select %13, %c1_i32, %c16_i32 : i32
    %15 = vector.broadcast %14 : i32 to vector<1x256xi32>
    %16 = arith.remsi %12, %15 : vector<1x256xi32>
    %c0_i32_12 = arith.constant 0 : i32
    %17 = vector.broadcast %c0_i32_12 : i32 to vector<1x256xi32>
    %18 = arith.cmpi ne, %16, %17 : vector<1x256xi32>
    %c0_i32_13 = arith.constant 0 : i32
    %19 = vector.broadcast %c0_i32_13 : i32 to vector<1x256xi32>
    %20 = arith.cmpi slt, %16, %19 : vector<1x256xi32>
    %c0_i32_14 = arith.constant 0 : i32
    %21 = arith.cmpi slt, %14, %c0_i32_14 : i32
    %22 = vector.broadcast %21 : i1 to vector<1x256xi1>
    %23 = vector.broadcast %22 : vector<1x256xi1> to vector<1x256xi1>
    %24 = arith.xori %20, %23 : vector<1x256xi1>
    %25 = arith.andi %24, %18 : vector<1x256xi1>
    %26 = vector.broadcast %14 : i32 to vector<1x256xi32>
    %27 = arith.addi %16, %26 : vector<1x256xi32>
    %28 = arith.select %25, %27, %16 : vector<1x256xi1>, vector<1x256xi32>
    %c1_i32_15 = arith.constant 1 : i32
    %29 = vector.broadcast %c1_i32_15 : i32 to vector<1x256xi32>
    %30 = arith.cmpi sge, %28, %29 : vector<1x256xi32>
    %c14_i32 = arith.constant 14 : i32
    %31 = vector.broadcast %c14_i32 : i32 to vector<1x256xi32>
    %32 = arith.cmpi sle, %28, %31 : vector<1x256xi32>
    %cst_16 = arith.constant 0.000000e+00 : f32
    %33 = vector.broadcast %cst_16 : f32 to vector<48x256xf32>
    %c0_17 = arith.constant 0 : index
    %c111 = arith.constant 111 : index
    %34 = vector.load %arg10[%c0_17, %c111] : memref<48x512xf32, #tpu.memory_space<vmem>>, vector<48x256xf32>
    %cst_18 = arith.constant 0.000000e+00 : f32
    %35 = vector.shape_cast %30 : vector<1x256xi1> to vector<1x256xi1>
    %36 = vector.broadcast %35 : vector<1x256xi1> to vector<48x256xi1>
    %37 = vector.broadcast %cst_18 : f32 to vector<48x256xf32>
    %38 = arith.select %36, %34, %37 : vector<48x256xi1>, vector<48x256xf32>
    %c0_19 = arith.constant 0 : index
    %c0_20 = arith.constant 0 : index
    %39 = vector.load %arg4[%c0_19, %c0_20] : memref<48x9xf32, #tpu.memory_space<vmem>>, vector<48x1xf32>
    %40 = vector.broadcast %39 : vector<48x1xf32> to vector<48x256xf32>
    %41 = arith.mulf %38, %40 : vector<48x256xf32>
    %42 = arith.addf %33, %41 : vector<48x256xf32>
    %c0_21 = arith.constant 0 : index
    %c112 = arith.constant 112 : index
    %43 = vector.load %arg10[%c0_21, %c112] : memref<48x512xf32, #tpu.memory_space<vmem>>, vector<48x256xf32>
    %c0_22 = arith.constant 0 : index
    %c1 = arith.constant 1 : index
    %44 = vector.load %arg4[%c0_22, %c1] : memref<48x9xf32, #tpu.memory_space<vmem>>, vector<48x1xf32>
    %45 = vector.broadcast %44 : vector<48x1xf32> to vector<48x256xf32>
    %46 = arith.mulf %43, %45 : vector<48x256xf32>
    %47 = arith.addf %42, %46 : vector<48x256xf32>
    %c0_23 = arith.constant 0 : index
    %c113 = arith.constant 113 : index
    %48 = vector.load %arg10[%c0_23, %c113] : memref<48x512xf32, #tpu.memory_space<vmem>>, vector<48x256xf32>
    %cst_24 = arith.constant 0.000000e+00 : f32
    %49 = vector.shape_cast %32 : vector<1x256xi1> to vector<1x256xi1>
    %50 = vector.broadcast %49 : vector<1x256xi1> to vector<48x256xi1>
    %51 = vector.broadcast %cst_24 : f32 to vector<48x256xf32>
    %52 = arith.select %50, %48, %51 : vector<48x256xi1>, vector<48x256xf32>
    %c0_25 = arith.constant 0 : index
    %c2 = arith.constant 2 : index
    %53 = vector.load %arg4[%c0_25, %c2] : memref<48x9xf32, #tpu.memory_space<vmem>>, vector<48x1xf32>
    %54 = vector.broadcast %53 : vector<48x1xf32> to vector<48x256xf32>
    %55 = arith.mulf %52, %54 : vector<48x256xf32>
    %56 = arith.addf %47, %55 : vector<48x256xf32>
    %c0_26 = arith.constant 0 : index
    %c127 = arith.constant 127 : index
    %57 = vector.load %arg10[%c0_26, %c127] : memref<48x512xf32, #tpu.memory_space<vmem>>, vector<48x256xf32>
    %cst_27 = arith.constant 0.000000e+00 : f32
    %58 = vector.shape_cast %30 : vector<1x256xi1> to vector<1x256xi1>
    %59 = vector.broadcast %58 : vector<1x256xi1> to vector<48x256xi1>
    %60 = vector.broadcast %cst_27 : f32 to vector<48x256xf32>
    %61 = arith.select %59, %57, %60 : vector<48x256xi1>, vector<48x256xf32>
    %c0_28 = arith.constant 0 : index
    %c3 = arith.constant 3 : index
    %62 = vector.load %arg4[%c0_28, %c3] : memref<48x9xf32, #tpu.memory_space<vmem>>, vector<48x1xf32>
    %63 = vector.broadcast %62 : vector<48x1xf32> to vector<48x256xf32>
    %64 = arith.mulf %61, %63 : vector<48x256xf32>
    %65 = arith.addf %56, %64 : vector<48x256xf32>
    %c0_29 = arith.constant 0 : index
    %c128_30 = arith.constant 128 : index
    %66 = vector.load %arg10[%c0_29, %c128_30] : memref<48x512xf32, #tpu.memory_space<vmem>>, vector<48x256xf32>
    %c0_31 = arith.constant 0 : index
    %c4 = arith.constant 4 : index
    %67 = vector.load %arg4[%c0_31, %c4] : memref<48x9xf32, #tpu.memory_space<vmem>>, vector<48x1xf32>
    %68 = vector.broadcast %67 : vector<48x1xf32> to vector<48x256xf32>
    %69 = arith.mulf %66, %68 : vector<48x256xf32>
    %70 = arith.addf %65, %69 : vector<48x256xf32>
    %c0_32 = arith.constant 0 : index
    %c129 = arith.constant 129 : index
    %71 = vector.load %arg10[%c0_32, %c129] : memref<48x512xf32, #tpu.memory_space<vmem>>, vector<48x256xf32>
    %cst_33 = arith.constant 0.000000e+00 : f32
    %72 = vector.shape_cast %32 : vector<1x256xi1> to vector<1x256xi1>
    %73 = vector.broadcast %72 : vector<1x256xi1> to vector<48x256xi1>
    %74 = vector.broadcast %cst_33 : f32 to vector<48x256xf32>
    %75 = arith.select %73, %71, %74 : vector<48x256xi1>, vector<48x256xf32>
    %c0_34 = arith.constant 0 : index
    %c5 = arith.constant 5 : index
    %76 = vector.load %arg4[%c0_34, %c5] : memref<48x9xf32, #tpu.memory_space<vmem>>, vector<48x1xf32>
    %77 = vector.broadcast %76 : vector<48x1xf32> to vector<48x256xf32>
    %78 = arith.mulf %75, %77 : vector<48x256xf32>
    %79 = arith.addf %70, %78 : vector<48x256xf32>
    %c0_35 = arith.constant 0 : index
    %c143 = arith.constant 143 : index
    %80 = vector.load %arg10[%c0_35, %c143] : memref<48x512xf32, #tpu.memory_space<vmem>>, vector<48x256xf32>
    %cst_36 = arith.constant 0.000000e+00 : f32
    %81 = vector.shape_cast %30 : vector<1x256xi1> to vector<1x256xi1>
    %82 = vector.broadcast %81 : vector<1x256xi1> to vector<48x256xi1>
    %83 = vector.broadcast %cst_36 : f32 to vector<48x256xf32>
    %84 = arith.select %82, %80, %83 : vector<48x256xi1>, vector<48x256xf32>
    %c0_37 = arith.constant 0 : index
    %c6 = arith.constant 6 : index
    %85 = vector.load %arg4[%c0_37, %c6] : memref<48x9xf32, #tpu.memory_space<vmem>>, vector<48x1xf32>
    %86 = vector.broadcast %85 : vector<48x1xf32> to vector<48x256xf32>
    %87 = arith.mulf %84, %86 : vector<48x256xf32>
    %88 = arith.addf %79, %87 : vector<48x256xf32>
    %c0_38 = arith.constant 0 : index
    %c144 = arith.constant 144 : index
    %89 = vector.load %arg10[%c0_38, %c144] : memref<48x512xf32, #tpu.memory_space<vmem>>, vector<48x256xf32>
    %c0_39 = arith.constant 0 : index
    %c7 = arith.constant 7 : index
    %90 = vector.load %arg4[%c0_39, %c7] : memref<48x9xf32, #tpu.memory_space<vmem>>, vector<48x1xf32>
    %91 = vector.broadcast %90 : vector<48x1xf32> to vector<48x256xf32>
    %92 = arith.mulf %89, %91 : vector<48x256xf32>
    %93 = arith.addf %88, %92 : vector<48x256xf32>
    %c0_40 = arith.constant 0 : index
    %c145 = arith.constant 145 : index
    %94 = vector.load %arg10[%c0_40, %c145] : memref<48x512xf32, #tpu.memory_space<vmem>>, vector<48x256xf32>
    %cst_41 = arith.constant 0.000000e+00 : f32
    %95 = vector.shape_cast %32 : vector<1x256xi1> to vector<1x256xi1>
    %96 = vector.broadcast %95 : vector<1x256xi1> to vector<48x256xi1>
    %97 = vector.broadcast %cst_41 : f32 to vector<48x256xf32>
    %98 = arith.select %96, %94, %97 : vector<48x256xi1>, vector<48x256xf32>
    %c0_42 = arith.constant 0 : index
    %c8 = arith.constant 8 : index
    %99 = vector.load %arg4[%c0_42, %c8] : memref<48x9xf32, #tpu.memory_space<vmem>>, vector<48x1xf32>
    %100 = vector.broadcast %99 : vector<48x1xf32> to vector<48x256xf32>
    %101 = arith.mulf %98, %100 : vector<48x256xf32>
    %102 = arith.addf %93, %101 : vector<48x256xf32>
    %c0_43 = arith.constant 0 : index
    %c0_44 = arith.constant 0 : index
    %103 = vector.load %arg5[%c0_43, %c0_44] : memref<48x1xf32, #tpu.memory_space<vmem>>, vector<48x1xf32>
    %104 = vector.broadcast %103 : vector<48x1xf32> to vector<48x256xf32>
    %105 = arith.addf %102, %104 : vector<48x256xf32>
    %106 = vector.extract_strided_slice %105 {offsets = [0, 0], sizes = [16, 256], strides = [1, 1]} : vector<48x256xf32> to vector<16x256xf32>
    %107 = vector.extract_strided_slice %105 {offsets = [16, 0], sizes = [16, 256], strides = [1, 1]} : vector<48x256xf32> to vector<16x256xf32>
    %108 = vector.extract_strided_slice %105 {offsets = [32, 0], sizes = [16, 256], strides = [1, 1]} : vector<48x256xf32> to vector<16x256xf32>
    %109 = arith.mulf %106, %106 : vector<16x256xf32>
    %cst_45 = arith.constant dense<0.000000e+00> : vector<16xf32>
    %110 = vector.multi_reduction <add>, %109, %cst_45 [1] : vector<16x256xf32> to vector<16xf32>
    %111 = vector.shape_cast %110 : vector<16xf32> to vector<16x1xf32>
    %cst_46 = arith.constant 1.000000e-24 : f32
    %112 = vector.broadcast %cst_46 : f32 to vector<16x1xf32>
    %113 = arith.maximumf %111, %112 : vector<16x1xf32>
    %114 = math.rsqrt %113 : vector<16x1xf32>
    %115 = vector.broadcast %114 : vector<16x1xf32> to vector<16x256xf32>
    %116 = arith.mulf %106, %115 : vector<16x256xf32>
    %117 = arith.mulf %107, %107 : vector<16x256xf32>
    %cst_47 = arith.constant dense<0.000000e+00> : vector<16xf32>
    %118 = vector.multi_reduction <add>, %117, %cst_47 [1] : vector<16x256xf32> to vector<16xf32>
    %119 = vector.shape_cast %118 : vector<16xf32> to vector<16x1xf32>
    %cst_48 = arith.constant 1.000000e-24 : f32
    %120 = vector.broadcast %cst_48 : f32 to vector<16x1xf32>
    %121 = arith.maximumf %119, %120 : vector<16x1xf32>
    %122 = math.rsqrt %121 : vector<16x1xf32>
    %123 = vector.broadcast %122 : vector<16x1xf32> to vector<16x256xf32>
    %124 = arith.mulf %107, %123 : vector<16x256xf32>
    %cst_49 = arith.constant 0.000000e+00 : f32
    %125 = vector.broadcast %cst_49 : f32 to vector<16x256xf32>
    %126 = vector.extract_strided_slice %116 {offsets = [0, 0], sizes = [4, 256], strides = [1, 1]} : vector<16x256xf32> to vector<4x256xf32>
    %127 = vector.extract_strided_slice %124 {offsets = [0, 0], sizes = [4, 256], strides = [1, 1]} : vector<16x256xf32> to vector<4x256xf32>
    %cst_50 = arith.constant dense<0.000000e+00> : vector<4x4xf32>
    %128 = tpu.matmul %126, %127, %cst_50 {dimension_numbers = #tpu.dot_dimension_numbers<[1], [1], [0], [0], [0, 0, 1, 0], [], []>} : vector<4x256xf32>, vector<4x256xf32>, vector<4x4xf32> -> vector<4x4xf32>
    %c0_51 = arith.constant 0 : index
    %129 = memref.load %arg6[%c0_51] : memref<4xf32, #tpu.memory_space<smem>>
    %130 = vector.broadcast %129 : f32 to vector<4x4xf32>
    %131 = arith.mulf %128, %130 : vector<4x4xf32>
    %cst_52 = arith.constant dense<0xFF800000> : vector<4xf32>
    %132 = vector.multi_reduction <maximumf>, %131, %cst_52 [1] : vector<4x4xf32> to vector<4xf32>
    %133 = vector.shape_cast %132 : vector<4xf32> to vector<4x1xf32>
    %134 = vector.broadcast %133 : vector<4x1xf32> to vector<4x4xf32>
    %135 = arith.subf %131, %134 : vector<4x4xf32>
    %136 = math.exp %135 : vector<4x4xf32>
    %cst_53 = arith.constant dense<0.000000e+00> : vector<4xf32>
    %137 = vector.multi_reduction <add>, %136, %cst_53 [1] : vector<4x4xf32> to vector<4xf32>
    %138 = vector.shape_cast %137 : vector<4xf32> to vector<4x1xf32>
    %139 = tpu.reciprocal %138 {approx = true} : vector<4x1xf32> -> vector<4x1xf32>
    %140 = arith.mulf %138, %139 : vector<4x1xf32>
    %cst_54 = arith.constant 2.000000e+00 : f32
    %141 = vector.broadcast %cst_54 : f32 to vector<4x1xf32>
    %142 = arith.subf %141, %140 : vector<4x1xf32>
    %143 = arith.mulf %139, %142 : vector<4x1xf32>
    %144 = vector.broadcast %143 : vector<4x1xf32> to vector<4x4xf32>
    %145 = arith.mulf %136, %144 : vector<4x4xf32>
    %146 = vector.extract_strided_slice %108 {offsets = [0, 0], sizes = [4, 256], strides = [1, 1]} : vector<16x256xf32> to vector<4x256xf32>
    %cst_55 = arith.constant dense<0.000000e+00> : vector<4x256xf32>
    %147 = tpu.matmul %145, %146, %cst_55 {dimension_numbers = #tpu.dot_dimension_numbers<[1], [0], [0], [1], [0, 0, 1, 1], [], []>} : vector<4x4xf32>, vector<4x256xf32>, vector<4x256xf32> -> vector<4x256xf32>
    %c0_56 = arith.constant 0 : index
    %c0_57 = arith.constant 0 : index
    %148 = vector.load %arg7[%c0_56, %c0_57] : memref<16x16xf32, #tpu.memory_space<vmem>>, vector<16x4xf32>
    %cst_58 = arith.constant dense<0.000000e+00> : vector<16x256xf32>
    %149 = tpu.matmul %148, %147, %cst_58 {dimension_numbers = #tpu.dot_dimension_numbers<[1], [0], [0], [1], [0, 0, 1, 1], [], []>} : vector<16x4xf32>, vector<4x256xf32>, vector<16x256xf32> -> vector<16x256xf32>
    %150 = arith.addf %125, %149 : vector<16x256xf32>
    %151 = vector.extract_strided_slice %116 {offsets = [4, 0], sizes = [4, 256], strides = [1, 1]} : vector<16x256xf32> to vector<4x256xf32>
    %152 = vector.extract_strided_slice %124 {offsets = [4, 0], sizes = [4, 256], strides = [1, 1]} : vector<16x256xf32> to vector<4x256xf32>
    %cst_59 = arith.constant dense<0.000000e+00> : vector<4x4xf32>
    %153 = tpu.matmul %151, %152, %cst_59 {dimension_numbers = #tpu.dot_dimension_numbers<[1], [1], [0], [0], [0, 0, 1, 0], [], []>} : vector<4x256xf32>, vector<4x256xf32>, vector<4x4xf32> -> vector<4x4xf32>
    %c1_60 = arith.constant 1 : index
    %154 = memref.load %arg6[%c1_60] : memref<4xf32, #tpu.memory_space<smem>>
    %155 = vector.broadcast %154 : f32 to vector<4x4xf32>
    %156 = arith.mulf %153, %155 : vector<4x4xf32>
    %cst_61 = arith.constant dense<0xFF800000> : vector<4xf32>
    %157 = vector.multi_reduction <maximumf>, %156, %cst_61 [1] : vector<4x4xf32> to vector<4xf32>
    %158 = vector.shape_cast %157 : vector<4xf32> to vector<4x1xf32>
    %159 = vector.broadcast %158 : vector<4x1xf32> to vector<4x4xf32>
    %160 = arith.subf %156, %159 : vector<4x4xf32>
    %161 = math.exp %160 : vector<4x4xf32>
    %cst_62 = arith.constant dense<0.000000e+00> : vector<4xf32>
    %162 = vector.multi_reduction <add>, %161, %cst_62 [1] : vector<4x4xf32> to vector<4xf32>
    %163 = vector.shape_cast %162 : vector<4xf32> to vector<4x1xf32>
    %164 = tpu.reciprocal %163 {approx = true} : vector<4x1xf32> -> vector<4x1xf32>
    %165 = arith.mulf %163, %164 : vector<4x1xf32>
    %cst_63 = arith.constant 2.000000e+00 : f32
    %166 = vector.broadcast %cst_63 : f32 to vector<4x1xf32>
    %167 = arith.subf %166, %165 : vector<4x1xf32>
    %168 = arith.mulf %164, %167 : vector<4x1xf32>
    %169 = vector.broadcast %168 : vector<4x1xf32> to vector<4x4xf32>
    %170 = arith.mulf %161, %169 : vector<4x4xf32>
    %171 = vector.extract_strided_slice %108 {offsets = [4, 0], sizes = [4, 256], strides = [1, 1]} : vector<16x256xf32> to vector<4x256xf32>
    %cst_64 = arith.constant dense<0.000000e+00> : vector<4x256xf32>
    %172 = tpu.matmul %170, %171, %cst_64 {dimension_numbers = #tpu.dot_dimension_numbers<[1], [0], [0], [1], [0, 0, 1, 1], [], []>} : vector<4x4xf32>, vector<4x256xf32>, vector<4x256xf32> -> vector<4x256xf32>
    %c0_65 = arith.constant 0 : index
    %c4_66 = arith.constant 4 : index
    %173 = vector.load %arg7[%c0_65, %c4_66] : memref<16x16xf32, #tpu.memory_space<vmem>>, vector<16x4xf32>
    %cst_67 = arith.constant dense<0.000000e+00> : vector<16x256xf32>
    %174 = tpu.matmul %173, %172, %cst_67 {dimension_numbers = #tpu.dot_dimension_numbers<[1], [0], [0], [1], [0, 0, 1, 1], [], []>} : vector<16x4xf32>, vector<4x256xf32>, vector<16x256xf32> -> vector<16x256xf32>
    %175 = arith.addf %150, %174 : vector<16x256xf32>
    %176 = vector.extract_strided_slice %116 {offsets = [8, 0], sizes = [4, 256], strides = [1, 1]} : vector<16x256xf32> to vector<4x256xf32>
    %177 = vector.extract_strided_slice %124 {offsets = [8, 0], sizes = [4, 256], strides = [1, 1]} : vector<16x256xf32> to vector<4x256xf32>
    %cst_68 = arith.constant dense<0.000000e+00> : vector<4x4xf32>
    %178 = tpu.matmul %176, %177, %cst_68 {dimension_numbers = #tpu.dot_dimension_numbers<[1], [1], [0], [0], [0, 0, 1, 0], [], []>} : vector<4x256xf32>, vector<4x256xf32>, vector<4x4xf32> -> vector<4x4xf32>
    %c2_69 = arith.constant 2 : index
    %179 = memref.load %arg6[%c2_69] : memref<4xf32, #tpu.memory_space<smem>>
    %180 = vector.broadcast %179 : f32 to vector<4x4xf32>
    %181 = arith.mulf %178, %180 : vector<4x4xf32>
    %cst_70 = arith.constant dense<0xFF800000> : vector<4xf32>
    %182 = vector.multi_reduction <maximumf>, %181, %cst_70 [1] : vector<4x4xf32> to vector<4xf32>
    %183 = vector.shape_cast %182 : vector<4xf32> to vector<4x1xf32>
    %184 = vector.broadcast %183 : vector<4x1xf32> to vector<4x4xf32>
    %185 = arith.subf %181, %184 : vector<4x4xf32>
    %186 = math.exp %185 : vector<4x4xf32>
    %cst_71 = arith.constant dense<0.000000e+00> : vector<4xf32>
    %187 = vector.multi_reduction <add>, %186, %cst_71 [1] : vector<4x4xf32> to vector<4xf32>
    %188 = vector.shape_cast %187 : vector<4xf32> to vector<4x1xf32>
    %189 = tpu.reciprocal %188 {approx = true} : vector<4x1xf32> -> vector<4x1xf32>
    %190 = arith.mulf %188, %189 : vector<4x1xf32>
    %cst_72 = arith.constant 2.000000e+00 : f32
    %191 = vector.broadcast %cst_72 : f32 to vector<4x1xf32>
    %192 = arith.subf %191, %190 : vector<4x1xf32>
    %193 = arith.mulf %189, %192 : vector<4x1xf32>
    %194 = vector.broadcast %193 : vector<4x1xf32> to vector<4x4xf32>
    %195 = arith.mulf %186, %194 : vector<4x4xf32>
    %196 = vector.extract_strided_slice %108 {offsets = [8, 0], sizes = [4, 256], strides = [1, 1]} : vector<16x256xf32> to vector<4x256xf32>
    %cst_73 = arith.constant dense<0.000000e+00> : vector<4x256xf32>
    %197 = tpu.matmul %195, %196, %cst_73 {dimension_numbers = #tpu.dot_dimension_numbers<[1], [0], [0], [1], [0, 0, 1, 1], [], []>} : vector<4x4xf32>, vector<4x256xf32>, vector<4x256xf32> -> vector<4x256xf32>
    %c0_74 = arith.constant 0 : index
    %c8_75 = arith.constant 8 : index
    %198 = vector.load %arg7[%c0_74, %c8_75] : memref<16x16xf32, #tpu.memory_space<vmem>>, vector<16x4xf32>
    %cst_76 = arith.constant dense<0.000000e+00> : vector<16x256xf32>
    %199 = tpu.matmul %198, %197, %cst_76 {dimension_numbers = #tpu.dot_dimension_numbers<[1], [0], [0], [1], [0, 0, 1, 1], [], []>} : vector<16x4xf32>, vector<4x256xf32>, vector<16x256xf32> -> vector<16x256xf32>
    %200 = arith.addf %175, %199 : vector<16x256xf32>
    %201 = vector.extract_strided_slice %116 {offsets = [12, 0], sizes = [4, 256], strides = [1, 1]} : vector<16x256xf32> to vector<4x256xf32>
    %202 = vector.extract_strided_slice %124 {offsets = [12, 0], sizes = [4, 256], strides = [1, 1]} : vector<16x256xf32> to vector<4x256xf32>
    %cst_77 = arith.constant dense<0.000000e+00> : vector<4x4xf32>
    %203 = tpu.matmul %201, %202, %cst_77 {dimension_numbers = #tpu.dot_dimension_numbers<[1], [1], [0], [0], [0, 0, 1, 0], [], []>} : vector<4x256xf32>, vector<4x256xf32>, vector<4x4xf32> -> vector<4x4xf32>
    %c3_78 = arith.constant 3 : index
    %204 = memref.load %arg6[%c3_78] : memref<4xf32, #tpu.memory_space<smem>>
    %205 = vector.broadcast %204 : f32 to vector<4x4xf32>
    %206 = arith.mulf %203, %205 : vector<4x4xf32>
    %cst_79 = arith.constant dense<0xFF800000> : vector<4xf32>
    %207 = vector.multi_reduction <maximumf>, %206, %cst_79 [1] : vector<4x4xf32> to vector<4xf32>
    %208 = vector.shape_cast %207 : vector<4xf32> to vector<4x1xf32>
    %209 = vector.broadcast %208 : vector<4x1xf32> to vector<4x4xf32>
    %210 = arith.subf %206, %209 : vector<4x4xf32>
    %211 = math.exp %210 : vector<4x4xf32>
    %cst_80 = arith.constant dense<0.000000e+00> : vector<4xf32>
    %212 = vector.multi_reduction <add>, %211, %cst_80 [1] : vector<4x4xf32> to vector<4xf32>
    %213 = vector.shape_cast %212 : vector<4xf32> to vector<4x1xf32>
    %214 = tpu.reciprocal %213 {approx = true} : vector<4x1xf32> -> vector<4x1xf32>
    %215 = arith.mulf %213, %214 : vector<4x1xf32>
    %cst_81 = arith.constant 2.000000e+00 : f32
    %216 = vector.broadcast %cst_81 : f32 to vector<4x1xf32>
    %217 = arith.subf %216, %215 : vector<4x1xf32>
    %218 = arith.mulf %214, %217 : vector<4x1xf32>
    %219 = vector.broadcast %218 : vector<4x1xf32> to vector<4x4xf32>
    %220 = arith.mulf %211, %219 : vector<4x4xf32>
    %221 = vector.extract_strided_slice %108 {offsets = [12, 0], sizes = [4, 256], strides = [1, 1]} : vector<16x256xf32> to vector<4x256xf32>
    %cst_82 = arith.constant dense<0.000000e+00> : vector<4x256xf32>
    %222 = tpu.matmul %220, %221, %cst_82 {dimension_numbers = #tpu.dot_dimension_numbers<[1], [0], [0], [1], [0, 0, 1, 1], [], []>} : vector<4x4xf32>, vector<4x256xf32>, vector<4x256xf32> -> vector<4x256xf32>
    %c0_83 = arith.constant 0 : index
    %c12 = arith.constant 12 : index
    %223 = vector.load %arg7[%c0_83, %c12] : memref<16x16xf32, #tpu.memory_space<vmem>>, vector<16x4xf32>
    %cst_84 = arith.constant dense<0.000000e+00> : vector<16x256xf32>
    %224 = tpu.matmul %223, %222, %cst_84 {dimension_numbers = #tpu.dot_dimension_numbers<[1], [0], [0], [1], [0, 0, 1, 1], [], []>} : vector<16x4xf32>, vector<4x256xf32>, vector<16x256xf32> -> vector<16x256xf32>
    %225 = arith.addf %200, %224 : vector<16x256xf32>
    %c0_85 = arith.constant 0 : index
    %c0_86 = arith.constant 0 : index
    %226 = vector.load %arg8[%c0_85, %c0_86] : memref<16x1xf32, #tpu.memory_space<vmem>>, vector<16x1xf32>
    %227 = vector.broadcast %226 : vector<16x1xf32> to vector<16x256xf32>
    %228 = arith.addf %225, %227 : vector<16x256xf32>
    %c0_87 = arith.constant 0 : index
    %c0_88 = arith.constant 0 : index
    %c0_89 = arith.constant 0 : index
    %229 = vector.load %arg9[%c0_87, %c0_88, %c0_89] : memref<1x16x256xf32, #tpu.memory_space<vmem>>, vector<1x16x256xf32>
    %230 = vector.shape_cast %229 : vector<1x16x256xf32> to vector<16x256xf32>
    %231 = vector.shape_cast %228 : vector<16x256xf32> to vector<1x16x256xf32>
    tpu.vector_store %arg9[%c0_87, %c0_88, %c0_89], %231 {strides = array<i32>} : memref<1x16x256xf32, #tpu.memory_space<vmem>>, vector<1x16x256xf32>,
    return
  }
  func.func @transform_0(%arg0: i32) -> (i32, i32, i32) {
    %c0_i32 = arith.constant 0 : i32
    %c0_i32_0 = arith.constant 0 : i32
    %c0_i32_1 = arith.constant 0 : i32
    return %arg0, %c0_i32, %c0_i32_0 : i32, i32, i32
  }
  func.func @transform_1(%arg0: i32) -> (i32, i32) {
    %c0_i32 = arith.constant 0 : i32
    %c0_i32_0 = arith.constant 0 : i32
    %c0_i32_1 = arith.constant 0 : i32
    return %c0_i32, %c0_i32_0 : i32, i32
  }
  func.func @transform_2(%arg0: i32) -> (i32, i32) {
    %c0_i32 = arith.constant 0 : i32
    %c0_i32_0 = arith.constant 0 : i32
    %c0_i32_1 = arith.constant 0 : i32
    return %c0_i32, %c0_i32_0 : i32, i32
  }
  func.func @transform_3(%arg0: i32) -> (i32, i32) {
    %c0_i32 = arith.constant 0 : i32
    %c0_i32_0 = arith.constant 0 : i32
    %c0_i32_1 = arith.constant 0 : i32
    return %c0_i32, %c0_i32_0 : i32, i32
  }
  func.func @transform_4(%arg0: i32) -> (i32, i32) {
    %c0_i32 = arith.constant 0 : i32
    %c0_i32_0 = arith.constant 0 : i32
    %c0_i32_1 = arith.constant 0 : i32
    return %c0_i32, %c0_i32_0 : i32, i32
  }
  func.func @transform_5(%arg0: i32) -> i32 {
    %c0_i32 = arith.constant 0 : i32
    %c0_i32_0 = arith.constant 0 : i32
    return %c0_i32 : i32
  }
  func.func @transform_6(%arg0: i32) -> (i32, i32) {
    %c0_i32 = arith.constant 0 : i32
    %c0_i32_0 = arith.constant 0 : i32
    %c0_i32_1 = arith.constant 0 : i32
    return %c0_i32, %c0_i32_0 : i32, i32
  }
  func.func @transform_7(%arg0: i32) -> (i32, i32) {
    %c0_i32 = arith.constant 0 : i32
    %c0_i32_0 = arith.constant 0 : i32
    %c0_i32_1 = arith.constant 0 : i32
    return %c0_i32, %c0_i32_0 : i32, i32
  }
  func.func @transform_8(%arg0: i32) -> (i32, i32, i32) {
    %c0_i32 = arith.constant 0 : i32
    %c0_i32_0 = arith.constant 0 : i32
    %c0_i32_1 = arith.constant 0 : i32
    return %arg0, %c0_i32, %c0_i32_0 : i32, i32, i32
  }
}

</mosaic_0001>

<llo_original>
// kernel: tpu_custom_call.1
$region0: #{tpu_custom_call.1}
  #allocation0 [shape = 'u32[]', space=smem, size = 0x4, offset = 0x4, fixed_abs, tag = 'smem constant byte address 0x4 - core index']
  #allocation1 [shape = 'u32[144,128]{1,0:T(1,128)}', space=vmem, size = 0x12000, scoped, tag = 'internal scratch']
  #allocation2 [shape = 'f32[48,512]{1,0:T(8,128)}', space=vmem, size = 0x18000, scoped, tag = 'scratch operand']
  %s0 = inlined_call_operand.vmem [shape: f32[2,16,256], index: 0, kind: input, shape index: {}]
  %s1 = inlined_call_operand.vmem [shape: f32[48,16], index: 1, kind: input, shape index: {}]
  %s2 = inlined_call_operand.vmem [shape: f32[48,1], index: 2, kind: input, shape index: {}]
  %s3 = inlined_call_operand.vmem [shape: f32[48,9], index: 3, kind: input, shape index: {}]
  %s4 = inlined_call_operand.vmem [shape: f32[48,1], index: 4, kind: input, shape index: {}]
  %s5 = inlined_call_operand.vmem [shape: f32[4], index: 5, kind: input, shape index: {}]
  %s6 = inlined_call_operand.vmem [shape: f32[16,16], index: 6, kind: input, shape index: {}]
  %s7 = inlined_call_operand.vmem [shape: f32[16,1], index: 7, kind: input, shape index: {}]
  %s8 = inlined_call_operand.hbm [shape: f32[2,16,256], index: 8, kind: output, shape index: {}]
  %s9 = sld [smem:[#allocation0]]
  $region69: #{tpu_custom_call.1} parent=0
    _
  %s11 = ssub.s32 1, %s9
  %s12 = scalar_select 0, %s11, %s9
  $region1: #{tpu_custom_call.1} parent=0
    #allocation3 [shape = 'u8[512]{0}', space=smem, size = 0x200, scoped, tag = 'input window, operand 5, single buffered']
    #allocation4 [shape = 's32[2]{0}', space=sflag, size = 0x8, scoped, tag = 'scoped memory for tpu_custom_call.1']
    #allocation5 [shape = 's32[2]{0}', space=sflag, size = 0x8, scoped, tag = 'scoped memory for tpu_custom_call.1']
    #allocation6 [shape = 'u8[32768]{0}', space=vmem, size = 0x8000, scoped, tag = 'output window, operand 0']
    %13 = vsyncpa [#allocation5], 0
    %14 = vsyncpa [#allocation4], 0
    %s15 = scalar_lea.sflag [#allocation4], 1
    %16 = vsyncpa %s15, 0
    loop: start=0, step=1, limit=4
    $region2: #{tpu_custom_call.1} parent=1 // loop_pre_header
      _
    $region3: #{tpu_custom_call.1} parent=1 // loop_header
      %s18 = sphi 0, %s22
      %p19 = scmp.ge.s32.totalorder %s18, 4
      %s28 = sphi 0, %s30
      %s31 = sphi 0, %s28
      %s32 = sphi 0, %s31
      %s48 = sphi 0, %s32
      %s52 = sphi 0, %s52
      %s54 = sphi 0, %s52
      %s55 = sphi 0, %s54
      %s69 = sphi 0, %s55
      %s73 = sphi 0, %s73
      %s75 = sphi 0, %s73
      %s76 = sphi 0, %s75
      %s90 = sphi 0, %s76
      %s94 = sphi 0, %s94
      %s96 = sphi 0, %s94
      %s97 = sphi 0, %s96
      %s111 = sphi 0, %s97
      %s115 = sphi 0, %s115
      %s117 = sphi 0, %s115
      %s118 = sphi 0, %s117
      %s132 = sphi 0, %s118
      %s136 = sphi 0, %s136
      %s138 = sphi 0, %s136
      %s139 = sphi 0, %s138
      %s153 = sphi 0, %s139
      %s157 = sphi 0, %s157
      %s159 = sphi 0, %s157
      %s160 = sphi 0, %s159
      %s174 = sphi 0, %s160
      %s178 = sphi 0, %s178
      %s180 = sphi 0, %s178
      %s181 = sphi 0, %s180
      %s195 = sphi 0, %s181
      %s201 = sphi 0, %s203
      %s204 = sphi 0, %s201
      %s205 = sphi 0, %s204
      %s221 = sphi 0, %s205
    $region4: #{tpu_custom_call.1} parent=1 // loop_header_branch
      %21 = sbr.rel (%p19) target = $region8
    $region5: #{tpu_custom_call.1} parent=1 // loop_body
      %s23 = ssub.s32 %s18, 1
      %s24 = ssub.s32 %s18, 2
      %s25 = sadd.s32 %s18, 1
      %s26 = ssub.s32 %s18, %s25
      %p27 = scmp.eq.s32.totalorder %s26, 0
      %s29 = sadd.s32 %s28, 1
      %s30 = scalar_select %p27, %s28, %s29
      %p33 = pneg %p27
      %p34 = scmp.eq.s32.totalorder %s18, 1
      %p35 = por %p33, %p34
      %p36 = scmp.ne.s32.totalorder %s28, %s31
      %p37 = scmp.eq.s32.totalorder %s18, 0
      %p38 = por %p36, %p37
      %p39 = scmp.ne.s32.totalorder %s28, %s31
      %p40 = scmp.eq.s32.totalorder %s23, 1
      %p41 = por %p39, %p40
      %p42 = scmp.ne.s32.totalorder %s31, %s32
      %p43 = scmp.eq.s32.totalorder %s23, 0
      %p44 = por %p42, %p43
      %p45 = scmp.ne.s32.totalorder %s31, %s32
      %p46 = scmp.eq.s32.totalorder %s24, 1
      %p47 = por %p45, %p46
      %p49 = scmp.ne.s32.totalorder %s32, %s48
      %p50 = scmp.eq.s32.totalorder %s24, 0
      %p51 = por %p49, %p50
      %s53 = sadd.s32 %s52, 1
      %p56 = scmp.eq.s32.totalorder %s18, 1
      %p57 = scmp.ne.s32.totalorder %s52, %s54
      %p58 = scmp.eq.s32.totalorder %s18, 0
      %p59 = por %p57, %p58
      %p60 = scmp.ne.s32.totalorder %s52, %s54
      %p61 = scmp.eq.s32.totalorder %s23, 1
      %p62 = por %p60, %p61
      %p63 = scmp.ne.s32.totalorder %s54, %s55
      %p64 = scmp.eq.s32.totalorder %s23, 0
      %p65 = por %p63, %p64
      %p66 = scmp.ne.s32.totalorder %s54, %s55
      %p67 = scmp.eq.s32.totalorder %s24, 1
      %p68 = por %p66, %p67
      %p70 = scmp.ne.s32.totalorder %s55, %s69
      %p71 = scmp.eq.s32.totalorder %s24, 0
      %p72 = por %p70, %p71
      %s74 = sadd.s32 %s73, 1
      %p77 = scmp.eq.s32.totalorder %s18, 1
      %p78 = scmp.ne.s32.totalorder %s73, %s75
      %p79 = scmp.eq.s32.totalorder %s18, 0
      %p80 = por %p78, %p79
      %p81 = scmp.ne.s32.totalorder %s73, %s75
      %p82 = scmp.eq.s32.totalorder %s23, 1
      %p83 = por %p81, %p82
      %p84 = scmp.ne.s32.totalorder %s75, %s76
      %p85 = scmp.eq.s32.totalorder %s23, 0
      %p86 = por %p84, %p85
      %p87 = scmp.ne.s32.totalorder %s75, %s76
      %p88 = scmp.eq.s32.totalorder %s24, 1
      %p89 = por %p87, %p88
      %p91 = scmp.ne.s32.totalorder %s76, %s90
      %p92 = scmp.eq.s32.totalorder %s24, 0
      %p93 = por %p91, %p92
      %s95 = sadd.s32 %s94, 1
      %p98 = scmp.eq.s32.totalorder %s18, 1
      %p99 = scmp.ne.s32.totalorder %s94, %s96
      %p100 = scmp.eq.s32.totalorder %s18, 0
      %p101 = por %p99, %p100
      %p102 = scmp.ne.s32.totalorder %s94, %s96
      %p103 = scmp.eq.s32.totalorder %s23, 1
      %p104 = por %p102, %p103
      %p105 = scmp.ne.s32.totalorder %s96, %s97
      %p106 = scmp.eq.s32.totalorder %s23, 0
      %p107 = por %p105, %p106
      %p108 = scmp.ne.s32.totalorder %s96, %s97
      %p109 = scmp.eq.s32.totalorder %s24, 1
      %p110 = por %p108, %p109
      %p112 = scmp.ne.s32.totalorder %s97, %s111
      %p113 = scmp.eq.s32.totalorder %s24, 0
      %p114 = por %p112, %p113
      %s116 = sadd.s32 %s115, 1
      %p119 = scmp.eq.s32.totalorder %s18, 1
      %p120 = scmp.ne.s32.totalorder %s115, %s117
      %p121 = scmp.eq.s32.totalorder %s18, 0
      %p122 = por %p120, %p121
      %p123 = scmp.ne.s32.totalorder %s115, %s117
      %p124 = scmp.eq.s32.totalorder %s23, 1
      %p125 = por %p123, %p124
      %p126 = scmp.ne.s32.totalorder %s117, %s118
      %p127 = scmp.eq.s32.totalorder %s23, 0
      %p128 = por %p126, %p127
      %p129 = scmp.ne.s32.totalorder %s117, %s118
      %p130 = scmp.eq.s32.totalorder %s24, 1
      %p131 = por %p129, %p130
      %p133 = scmp.ne.s32.totalorder %s118, %s132
      %p134 = scmp.eq.s32.totalorder %s24, 0
      %p135 = por %p133, %p134
      %s137 = sadd.s32 %s136, 1
      %p140 = scmp.eq.s32.totalorder %s18, 1
      %p141 = scmp.ne.s32.totalorder %s136, %s138
      %p142 = scmp.eq.s32.totalorder %s18, 0
      %p143 = por %p141, %p142
      %p144 = scmp.ne.s32.totalorder %s136, %s138
      %p145 = scmp.eq.s32.totalorder %s23, 1
      %p146 = por %p144, %p145
      %p147 = scmp.ne.s32.totalorder %s138, %s139
      %p148 = scmp.eq.s32.totalorder %s23, 0
      %p149 = por %p147, %p148
      %p150 = scmp.ne.s32.totalorder %s138, %s139
      %p151 = scmp.eq.s32.totalorder %s24, 1
      %p152 = por %p150, %p151
      %p154 = scmp.ne.s32.totalorder %s139, %s153
      %p155 = scmp.eq.s32.totalorder %s24, 0
      %p156 = por %p154, %p155
      %s158 = sadd.s32 %s157, 1
      %p161 = scmp.eq.s32.totalorder %s18, 1
      %p162 = scmp.ne.s32.totalorder %s157, %s159
      %p163 = scmp.eq.s32.totalorder %s18, 0
      %p164 = por %p162, %p163
      %p165 = scmp.ne.s32.totalorder %s157, %s159
      %p166 = scmp.eq.s32.totalorder %s23, 1
      %p167 = por %p165, %p166
      %p168 = scmp.ne.s32.totalorder %s159, %s160
      %p169 = scmp.eq.s32.totalorder %s23, 0
      %p170 = por %p168, %p169
      %p171 = scmp.ne.s32.totalorder %s159, %s160
      %p172 = scmp.eq.s32.totalorder %s24, 1
      %p173 = por %p171, %p172
      %p175 = scmp.ne.s32.totalorder %s160, %s174
      %p176 = scmp.eq.s32.totalorder %s24, 0
      %p177 = por %p175, %p176
      %s179 = sadd.s32 %s178, 1
      %p182 = scmp.eq.s32.totalorder %s18, 1
      %p183 = scmp.ne.s32.totalorder %s178, %s180
      %p184 = scmp.eq.s32.totalorder %s18, 0
      %p185 = por %p183, %p184
      %p186 = scmp.ne.s32.totalorder %s178, %s180
      %p187 = scmp.eq.s32.totalorder %s23, 1
      %p188 = por %p186, %p187
      %p189 = scmp.ne.s32.totalorder %s180, %s181
      %p190 = scmp.eq.s32.totalorder %s23, 0
      %p191 = por %p189, %p190
      %p192 = scmp.ne.s32.totalorder %s180, %s181
      %p193 = scmp.eq.s32.totalorder %s24, 1
      %p194 = por %p192, %p193
      %p196 = scmp.ne.s32.totalorder %s181, %s195
      %p197 = scmp.eq.s32.totalorder %s24, 0
      %p198 = por %p196, %p197
      %s199 = ssub.s32 %s18, %s25
      %p200 = scmp.eq.s32.totalorder %s199, 0
      %s202 = sadd.s32 %s201, 1
      %s203 = scalar_select %p200, %s201, %s202
      %p206 = pneg %p200
      %p207 = scmp.eq.s32.totalorder %s18, 1
      %p208 = por %p206, %p207
      %p209 = scmp.ne.s32.totalorder %s201, %s204
      %p210 = scmp.eq.s32.totalorder %s18, 0
      %p211 = por %p209, %p210
      %p212 = scmp.ne.s32.totalorder %s201, %s204
      %p213 = scmp.eq.s32.totalorder %s23, 1
      %p214 = por %p212, %p213
      %p215 = scmp.ne.s32.totalorder %s204, %s205
      %p216 = scmp.eq.s32.totalorder %s23, 0
      %p217 = por %p215, %p216
      %p218 = scmp.ne.s32.totalorder %s204, %s205
      %p219 = scmp.eq.s32.totalorder %s24, 1
      %p220 = por %p218, %p219
      %p222 = scmp.ne.s32.totalorder %s205, %s221
      %p223 = scmp.eq.s32.totalorder %s24, 0
      %p224 = por %p222, %p223
      %p225 = scmp.le.s32.totalorder 1, %s18
      %p226 = scmp.lt.s32.totalorder %s18, 3
      %p227 = pnand %p225, %p226
      %p228 = pneg %p227
      // Predicated region
      $region9: #{tpu_custom_call.1} parent=5 // pred_check
        _
      $region10: #{tpu_custom_call.1} parent=5 // pred_check_branch
        %230 = sbr.rel (%p227) target = $region12
      $region11: #{tpu_custom_call.1} parent=5 // pred_region
        %s231 = ssub.s32 %s18, 1
        // Predicated region
        $region13: #{tpu_custom_call.1} parent=11 // pred_check
          %p232 = pneg %p65
        $region14: #{tpu_custom_call.1} parent=11 // pred_check_branch
          %234 = sbr.rel (%p232) target = $region16
        $region15: #{tpu_custom_call.1} parent=11 // pred_region
          _
        $region16: #{tpu_custom_call.1} parent=11 // pred_fallthru
          _
        // Predicated region
        $region17: #{tpu_custom_call.1} parent=11 // pred_check
          %p235 = pneg %p86
        $region18: #{tpu_custom_call.1} parent=11 // pred_check_branch
          %237 = sbr.rel (%p235) target = $region20
        $region19: #{tpu_custom_call.1} parent=11 // pred_region
          _
        $region20: #{tpu_custom_call.1} parent=11 // pred_fallthru
          _
        // Predicated region
        $region21: #{tpu_custom_call.1} parent=11 // pred_check
          %p238 = pneg %p107
        $region22: #{tpu_custom_call.1} parent=11 // pred_check_branch
          %240 = sbr.rel (%p238) target = $region24
        $region23: #{tpu_custom_call.1} parent=11 // pred_region
          _
        $region24: #{tpu_custom_call.1} parent=11 // pred_fallthru
          _
        // Predicated region
        $region25: #{tpu_custom_call.1} parent=11 // pred_check
          %p241 = pneg %p128
        $region26: #{tpu_custom_call.1} parent=11 // pred_check_branch
          %243 = sbr.rel (%p241) target = $region28
        $region27: #{tpu_custom_call.1} parent=11 // pred_region
          _
        $region28: #{tpu_custom_call.1} parent=11 // pred_fallthru
          _
        // Predicated region
        $region29: #{tpu_custom_call.1} parent=11 // pred_check
          %p244 = pneg %p149
        $region30: #{tpu_custom_call.1} parent=11 // pred_check_branch
          %246 = sbr.rel (%p244) target = $region32
        $region31: #{tpu_custom_call.1} parent=11 // pred_region
          %s248 = ssub.s32 16, 16
          %249 = vsyncadd [#allocation5], %s248
          %s251 = sshll.u32 %s5, 4
          %s252 = int_to_ptr.vmem [resolvable:$true] %s251
          %254 = dma.vmem_to_smem %s252, 16, [#allocation3], [#allocation5]
        $region32: #{tpu_custom_call.1} parent=11 // pred_fallthru
          _
        // Predicated region
        $region33: #{tpu_custom_call.1} parent=11 // pred_check
          %p255 = pneg %p170
        $region34: #{tpu_custom_call.1} parent=11 // pred_check_branch
          %257 = sbr.rel (%p255) target = $region36
        $region35: #{tpu_custom_call.1} parent=11 // pred_region
          _
        $region36: #{tpu_custom_call.1} parent=11 // pred_fallthru
          _
        // Predicated region
        $region37: #{tpu_custom_call.1} parent=11 // pred_check
          %p258 = pneg %p191
        $region38: #{tpu_custom_call.1} parent=11 // pred_check_branch
          %260 = sbr.rel (%p258) target = $region40
        $region39: #{tpu_custom_call.1} parent=11 // pred_region
          _
        $region40: #{tpu_custom_call.1} parent=11 // pred_fallthru
          _
      $region12: #{tpu_custom_call.1} parent=5 // pred_fallthru
        _
      %p261 = scmp.lt.s32.totalorder %s18, 2
      // Predicated region
      $region41: #{tpu_custom_call.1} parent=5 // pred_check
        %p262 = pneg %p261
      $region42: #{tpu_custom_call.1} parent=5 // pred_check_branch
        %264 = sbr.rel (%p262) target = $region44
      $region43: #{tpu_custom_call.1} parent=5 // pred_region
        // Predicated region
        $region45: #{tpu_custom_call.1} parent=43 // pred_check
          %p265 = pneg %p38
        $region46: #{tpu_custom_call.1} parent=43 // pred_check_branch
          %267 = sbr.rel (%p265) target = $region48
        $region47: #{tpu_custom_call.1} parent=43 // pred_region
          %p268 = scmp.lt.s32.totalorder %s18, 1
          %s269 = scalar_select %p268, %s18, 1
          %s270 = smul.addr %s269, 4
          %s271 = smul.addr %s270, 8
          %s272 = scalar_lea.vmem %s0, %s271
        $region48: #{tpu_custom_call.1} parent=43 // pred_fallthru
          _
      $region44: #{tpu_custom_call.1} parent=5 // pred_fallthru
        _
      %p273 = scmp.le.s32.totalorder 1, %s18
      %p274 = scmp.lt.s32.totalorder %s18, 3
      %p275 = pnand %p273, %p274
      %p276 = pneg %p275
      // Predicated region
      $region49: #{tpu_custom_call.1} parent=5 // pred_check
        _
      $region50: #{tpu_custom_call.1} parent=5 // pred_check_branch
        %278 = sbr.rel (%p275) target = $region52
      $region51: #{tpu_custom_call.1} parent=5 // pred_region
        %s279 = ssub.s32 %s18, 1
        // Predicated region
        $region53: #{tpu_custom_call.1} parent=51 // pred_check
          %p280 = pneg %p149
        $region54: #{tpu_custom_call.1} parent=51 // pred_check_branch
          %282 = sbr.rel (%p280) target = $region56
        $region55: #{tpu_custom_call.1} parent=51 // pred_region
          %283 = dma.done [#allocation5], 16
        $region56: #{tpu_custom_call.1} parent=51 // pred_fallthru
          _
        %284 = sfence
        %p285 = scmp.lt.s32.totalorder %s23, 1
        %s286 = scalar_select %p285, %s23, 1
        %s287 = smul.addr %s286, 4
        %s288 = smul.addr %s287, 8
        %s289 = scalar_lea.vmem %s0, %s288
        %p290 = pneg %p44
        %p291 = pneg %p41
        %p292 = pneg %p65
        %p293 = pneg %p62
        %p294 = pneg %p86
        %p295 = pneg %p83
        %p296 = pneg %p107
        %p297 = pneg %p104
        %p298 = pneg %p128
        %p299 = pneg %p125
        %p300 = pneg %p149
        %p301 = pneg %p146
        %p302 = pneg %p170
        %p303 = pneg %p167
        %p304 = pneg %p191
        %p305 = pneg %p188
        %p306 = pneg %p217
        %p307 = pneg %p214
        %s308 = sand.u32 %s204, 1
        %s309 = scalar_lea.sflag [#allocation4], %s308
        %s310 = sand.u32 %s204, 1
        %s311 = smul.addr %s310, 32
        %s312 = scalar_lea.vmem [#allocation6], %s311
        %p313 = scmp.lt.s32.totalorder %s23, 1
        %s314 = scalar_select %p313, %s23, 1
        %s315 = smul.addr %s314, 4
        %s316 = smul.addr %s315, 8
        %s317 = scalar_lea.vmem %s0, %s316
        %v318 = vld [vmem:[%s317] sm:$0xff]
        %v319 = vld [vmem:[%s317 + $0x8] sm:$0xff]
        %v320 = vld [vmem:[%s317 + $0x10] sm:$0xff]
        %v321 = vld [vmem:[%s317 + $0x18] sm:$0xff]
        %v322 = vld [vmem:[%s1] sm:$0xff]
        %v323 = vld [vmem:[%s1 + $0x8] sm:$0xff]
        %v324 = vld [vmem:[%s1 + $0x10] sm:$0xff]
        %v325 = vld [vmem:[%s1 + $0x18] sm:$0xff]
        %v326 = vld [vmem:[%s1 + $0x20] sm:$0xff]
        %v327 = vld [vmem:[%s1 + $0x28] sm:$0xff]
        %v328 = vld [vmem:[%s2] sm:$0xff]
        %v329 = vld [vmem:[%s2 + $0x8] sm:$0xff]
        %v330 = vld [vmem:[%s2 + $0x10] sm:$0xff]
        %v331 = vld [vmem:[%s2 + $0x18] sm:$0xff]
        %v332 = vld [vmem:[%s2 + $0x20] sm:$0xff]
        %v333 = vld [vmem:[%s2 + $0x28] sm:$0xff]
        %335 = vset.pattern.permute.xlu0 0
        %336 = vperm.xlu0 %335, %v328
        %v337 = vpop.permute.xlu0 %336
        %340 = vset.pattern.permute.xlu0 0
        %341 = vperm.xlu0 %340, %v329
        %v342 = vpop.permute.xlu0 %341
        %345 = vset.pattern.permute.xlu0 0
        %346 = vperm.xlu0 %345, %v330
        %v347 = vpop.permute.xlu0 %346
        %350 = vset.pattern.permute.xlu0 0
        %351 = vperm.xlu0 %350, %v331
        %v352 = vpop.permute.xlu0 %351
        %355 = vset.pattern.permute.xlu0 0
        %356 = vperm.xlu0 %355, %v332
        %v357 = vpop.permute.xlu0 %356
        %360 = vset.pattern.permute.xlu0 0
        %361 = vperm.xlu0 %360, %v333
        %v362 = vpop.permute.xlu0 %361
        %vm364 = vcmask 130048
        %v366 = vsel %vm364, %v322, 0
        %v369 = vsel %vm364, %v323, 0
        %v372 = vsel %vm364, %v324, 0
        %v375 = vsel %vm364, %v325, 0
        %v378 = vsel %vm364, %v326, 0
        %v381 = vsel %vm364, %v327, 0
        %383 = vmatprep.subr.mxu0 %v319
        %384 = vmatpush1.msra.mxu0 %v318
        %385 = vmatprep.subr.mxu0 %v321
        %386 = vmatpush1.msra.mxu0 %v320
        %387 = vmatprep.subr.mxu0 0.0
        %388 = vmatpush1.msra.mxu0 0.0
        %389 = vmatprep.subr.mxu0 0.0
        %390 = vmatpush1.msra.mxu0 0.0
        %391 = vmatprep.subr.mxu0 0.0
        %392 = vmatpush1.msra.mxu0 0.0
        %393 = vmatprep.subr.mxu0 0.0
        %394 = vmatpush1.msra.mxu0 0.0
        %395 = vmatprep.subr.mxu0 0.0
        %396 = vmatpush1.msra.mxu0 0.0
        %397 = vmatprep.subr.mxu0 0.0
        %398 = vmatpush1.msra.mxu0 0.0
        %399 = vmatprep.subr.mxu0 0.0
        %400 = vmatpush1.msra.mxu0 0.0
        %401 = vmatprep.subr.mxu0 0.0
        %402 = vmatpush1.msra.mxu0 0.0
        %403 = vmatprep.subr.mxu0 0.0
        %404 = vmatpush1.msra.mxu0 0.0
        %405 = vmatprep.subr.mxu0 0.0
        %406 = vmatpush1.msra.mxu0 0.0
        %407 = vmatprep.subr.mxu0 0.0
        %408 = vmatpush1.msra.mxu0 0.0
        %409 = vmatprep.subr.mxu0 0.0
        %410 = vmatpush1.msra.mxu0 0.0
        %411 = vmatprep.subr.mxu0 0.0
        %412 = vmatpush1.msra.mxu0 0.0
        %413 = vmatprep.subr.mxu0 0.0
        %414 = vmatpush1.msra.mxu0 0.0
        %415 = vmatprep.subr.mxu0 0.0
        %416 = vmatpush1.msra.mxu0 0.0
        %417 = vmatprep.subr.mxu0 0.0
        %418 = vmatpush1.msra.mxu0 0.0
        %419 = vmatprep.subr.mxu0 0.0
        %420 = vmatpush1.msra.mxu0 0.0
        %421 = vmatprep.subr.mxu0 0.0
        %422 = vmatpush1.msra.mxu0 0.0
        %423 = vmatprep.subr.mxu0 0.0
        %424 = vmatpush1.msra.mxu0 0.0
        %425 = vmatprep.subr.mxu0 0.0
        %426 = vmatpush1.msra.mxu0 0.0
        %427 = vmatprep.subr.mxu0 0.0
        %428 = vmatpush1.msra.mxu0 0.0
        %429 = vmatprep.subr.mxu0 0.0
        %430 = vmatpush1.msra.mxu0 0.0
        %431 = vmatprep.subr.mxu0 0.0
        %432 = vmatpush1.msra.mxu0 0.0
        %433 = vmatprep.subr.mxu0 0.0
        %434 = vmatpush1.msra.mxu0 0.0
        %435 = vmatprep.subr.mxu0 0.0
        %436 = vmatpush1.msra.mxu0 0.0
        %437 = vmatprep.subr.mxu0 0.0
        %438 = vmatpush1.msra.mxu0 0.0
        %439 = vmatprep.subr.mxu0 0.0
        %440 = vmatpush1.msra.mxu0 0.0
        %441 = vmatprep.subr.mxu0 0.0
        %442 = vmatpush1.msra.mxu0 0.0
        %443 = vmatprep.subr.mxu0 0.0
        %444 = vmatpush1.msra.mxu0 0.0
        %445 = vmatprep.subr.mxu0 0.0
        %446 = vmatpush1.msra.mxu0 0.0
        %447 = vmatprep.mubr.f32.mxu0 0.0
        %448 = vmatmul.mubr.f32.gmra.mrb[0].mxu0 %v366
        %v449 = vpop.f32.mrb[0].mxu0
        %v450 = vadd.f32 %v337, %v449
        %v451 = vpop.f32.mrb[0].mxu0
        %v452 = vadd.f32 %v337, %v451
        %453 = vmatprep.mubr.f32.mxu0 0.0
        %454 = vmatmul.mubr.f32.gmra.mrb[0].mxu0 %v369
        %v455 = vpop.f32.mrb[0].mxu0
        %v456 = vadd.f32 %v342, %v455
        %v457 = vpop.f32.mrb[0].mxu0
        %v458 = vadd.f32 %v342, %v457
        %459 = vmatprep.mubr.f32.mxu0 0.0
        %460 = vmatmul.mubr.f32.gmra.mrb[0].mxu0 %v372
        %v461 = vpop.f32.mrb[0].mxu0
        %v462 = vadd.f32 %v347, %v461
        %v463 = vpop.f32.mrb[0].mxu0
        %v464 = vadd.f32 %v347, %v463
        %465 = vmatprep.mubr.f32.mxu0 0.0
        %466 = vmatmul.mubr.f32.gmra.mrb[0].mxu0 %v375
        %v467 = vpop.f32.mrb[0].mxu0
        %v468 = vadd.f32 %v352, %v467
        %v469 = vpop.f32.mrb[0].mxu0
        %v470 = vadd.f32 %v352, %v469
        %471 = vmatprep.mubr.f32.mxu0 0.0
        %472 = vmatmul.mubr.f32.gmra.mrb[0].mxu0 %v378
        %v473 = vpop.f32.mrb[0].mxu0
        %v474 = vadd.f32 %v357, %v473
        %v475 = vpop.f32.mrb[0].mxu0
        %v476 = vadd.f32 %v357, %v475
        %477 = vmatprep.mubr.f32.mxu0 0.0
        %478 = vmatmul.mubr.f32.gmra.mrb[0].mxu0 %v381
        %v479 = vpop.f32.mrb[0].mxu0
        %v480 = vadd.f32 %v362, %v479
        %v481 = vpop.f32.mrb[0].mxu0
        %v482 = vadd.f32 %v362, %v481
        %483 = vdwg.mxu0
        %484 = vst [vmem:[#allocation2] sm:$0xff] 0.0
        %485 = vst [vmem:[#allocation2 + $0x20] sm:$0xff] 0.0
        %486 = vst [vmem:[#allocation2 + $0x40] sm:$0xff] 0.0
        %487 = vst [vmem:[#allocation2 + $0x60] sm:$0xff] 0.0
        %488 = vst [vmem:[#allocation2 + $0x80] sm:$0xff] 0.0
        %489 = vst [vmem:[#allocation2 + $0xa0] sm:$0xff] 0.0
        %490 = vst [vmem:[#allocation2 + $0x18] sm:$0xff] 0.0
        %491 = vst [vmem:[#allocation2 + $0x38] sm:$0xff] 0.0
        %492 = vst [vmem:[#allocation2 + $0x58] sm:$0xff] 0.0
        %493 = vst [vmem:[#allocation2 + $0x78] sm:$0xff] 0.0
        %494 = vst [vmem:[#allocation2 + $0x98] sm:$0xff] 0.0
        %495 = vst [vmem:[#allocation2 + $0xb8] sm:$0xff] 0.0
        %496 = vst [vmem:[#allocation2 + $0x8] sm:$0xff] %v450
        %497 = vst [vmem:[#allocation2 + $0x10] sm:$0xff] %v452
        %498 = vst [vmem:[#allocation2 + $0x28] sm:$0xff] %v456
        %499 = vst [vmem:[#allocation2 + $0x30] sm:$0xff] %v458
        %500 = vst [vmem:[#allocation2 + $0x48] sm:$0xff] %v462
        %501 = vst [vmem:[#allocation2 + $0x50] sm:$0xff] %v464
        %502 = vst [vmem:[#allocation2 + $0x68] sm:$0xff] %v468
        %503 = vst [vmem:[#allocation2 + $0x70] sm:$0xff] %v470
        %504 = vst [vmem:[#allocation2 + $0x88] sm:$0xff] %v474
        %505 = vst [vmem:[#allocation2 + $0x90] sm:$0xff] %v476
        %506 = vst [vmem:[#allocation2 + $0xa8] sm:$0xff] %v480
        %507 = vst [vmem:[#allocation2 + $0xb0] sm:$0xff] %v482
        %v508 = vlaneseq
        %v509 = vand.u32 %v508, 127
        %v510 = vadd.s32 %v509, 128
        %vm511 = vcmp.lt.s32.totalorder %v509, 0
        %v512 = vsub.s32 0, %v509
        %v513 = vsel %vm511, %v512, %v509
        %v514 = vshrl.u32 %v513, 4
        %v515 = vand.u32 %v513, 15
        %v516 = vsub.s32 0, %v515
        %v517 = vsel %vm511, %v516, %v515
        %vm518 = vcmp.lt.s32.totalorder %v510, 0
        %v519 = vsub.s32 0, %v510
        %v520 = vsel %vm518, %v519, %v510
        %v521 = vshrl.u32 %v520, 4
        %v522 = vand.u32 %v520, 15
        %v523 = vsub.s32 0, %v522
        %v524 = vsel %vm518, %v523, %v522
        %vm525 = vcmp.ne.s32.totalorder %v517, 0
        %vm526 = vcmp.ne.s32.totalorder %v524, 0
        %vm527 = vcmp.lt.s32.totalorder %v517, 0
        %vm528 = vcmp.lt.s32.totalorder %v524, 0
        %vm529 = vmand %vm527, %vm525
        %vm530 = vmand %vm528, %vm526
        %v531 = vadd.s32 %v517, 16
        %v532 = vadd.s32 %v524, 16
        %v533 = vsel %vm529, %v531, %v517
        %v534 = vsel %vm530, %v532, %v524
        %vm535 = vcmp.ge.s32.totalorder %v533, 1
        %vm536 = vcmp.ge.s32.totalorder %v534, 1
        %vm537 = vcmp.le.s32.totalorder %v533, 14
        %vm538 = vcmp.le.s32.totalorder %v534, 14
        %v539 = vld [vmem:[#allocation2] sm:$0xff]
        %v540 = vld [vmem:[#allocation2 + $0x8] sm:$0xff]
        %v541 = vld [vmem:[#allocation2 + $0x10] sm:$0xff]
        %v542 = vld [vmem:[#allocation2 + $0x20] sm:$0xff]
        %v543 = vld [vmem:[#allocation2 + $0x28] sm:$0xff]
        %v544 = vld [vmem:[#allocation2 + $0x30] sm:$0xff]
        %v545 = vld [vmem:[#allocation2 + $0x40] sm:$0xff]
        %v546 = vld [vmem:[#allocation2 + $0x48] sm:$0xff]
        %v547 = vld [vmem:[#allocation2 + $0x50] sm:$0xff]
        %v548 = vld [vmem:[#allocation2 + $0x60] sm:$0xff]
        %v549 = vld [vmem:[#allocation2 + $0x68] sm:$0xff]
        %v550 = vld [vmem:[#allocation2 + $0x70] sm:$0xff]
        %v551 = vld [vmem:[#allocation2 + $0x80] sm:$0xff]
        %v552 = vld [vmem:[#allocation2 + $0x88] sm:$0xff]
        %v553 = vld [vmem:[#allocation2 + $0x90] sm:$0xff]
        %v554 = vld [vmem:[#allocation2 + $0xa0] sm:$0xff]
        %v555 = vld [vmem:[#allocation2 + $0xa8] sm:$0xff]
        %v556 = vld [vmem:[#allocation2 + $0xb0] sm:$0xff]
        %v557 = vsel %vm535, 1, 0
        %v558 = vsel %vm536, 1, 0
        %vm559 = vcmp.eq.s32.totalorder %v557, 1
        %vm560 = vcmp.eq.s32.totalorder %v558, 1
        %579 = vrot.lane.b32.xlu0 %v539, 17
        %v580 = vpop.permute.xlu0 %579
        %581 = vrot.lane.b32.xlu0 %v540, 17
        %v582 = vpop.permute.xlu0 %581
        %583 = vrot.lane.b32.xlu0 %v541, 17
        %v584 = vpop.permute.xlu0 %583
        %585 = vrot.lane.b32.xlu0 %v542, 17
        %v586 = vpop.permute.xlu0 %585
        %587 = vrot.lane.b32.xlu0 %v543, 17
        %v588 = vpop.permute.xlu0 %587
        %589 = vrot.lane.b32.xlu0 %v544, 17
        %v590 = vpop.permute.xlu0 %589
        %591 = vrot.lane.b32.xlu0 %v545, 17
        %v592 = vpop.permute.xlu0 %591
        %593 = vrot.lane.b32.xlu0 %v546, 17
        %v594 = vpop.permute.xlu0 %593
        %595 = vrot.lane.b32.xlu0 %v547, 17
        %v596 = vpop.permute.xlu0 %595
        %597 = vrot.lane.b32.xlu0 %v548, 17
        %v598 = vpop.permute.xlu0 %597
        %599 = vrot.lane.b32.xlu0 %v549, 17
        %v600 = vpop.permute.xlu0 %599
        %601 = vrot.lane.b32.xlu0 %v550, 17
        %v602 = vpop.permute.xlu0 %601
        %603 = vrot.lane.b32.xlu0 %v551, 17
        %v604 = vpop.permute.xlu0 %603
        %605 = vrot.lane.b32.xlu0 %v552, 17
        %v606 = vpop.permute.xlu0 %605
        %607 = vrot.lane.b32.xlu0 %v553, 17
        %v608 = vpop.permute.xlu0 %607
        %609 = vrot.lane.b32.xlu0 %v554, 17
        %v610 = vpop.permute.xlu0 %609
        %611 = vrot.lane.b32.xlu0 %v555, 17
        %v612 = vpop.permute.xlu0 %611
        %613 = vrot.lane.b32.xlu0 %v556, 17
        %v614 = vpop.permute.xlu0 %613
        %vm615 = vcmask 138240
        %v616 = vsel %vm615, %v580, %v582
        %v617 = vsel %vm615, %v582, %v584
        %v618 = vsel %vm615, %v586, %v588
        %v619 = vsel %vm615, %v588, %v590
        %v620 = vsel %vm615, %v592, %v594
        %v621 = vsel %vm615, %v594, %v596
        %v622 = vsel %vm615, %v598, %v600
        %v623 = vsel %vm615, %v600, %v602
        %v624 = vsel %vm615, %v604, %v606
        %v625 = vsel %vm615, %v606, %v608
        %v626 = vsel %vm615, %v610, %v612
        %v627 = vsel %vm615, %v612, %v614
        %v640 = vsel %vm559, %v616, 0.0
        %v641 = vsel %vm560, %v617, 0.0
        %v642 = vsel %vm559, %v618, 0.0
        %v643 = vsel %vm560, %v619, 0.0
        %v644 = vsel %vm559, %v620, 0.0
        %v645 = vsel %vm560, %v621, 0.0
        %v646 = vsel %vm559, %v622, 0.0
        %v647 = vsel %vm560, %v623, 0.0
        %v648 = vsel %vm559, %v624, 0.0
        %v649 = vsel %vm560, %v625, 0.0
        %v650 = vsel %vm559, %v626, 0.0
        %v651 = vsel %vm560, %v627, 0.0
        %v652 = vld [vmem:[%s3] sm:$0xff]
        %v653 = vld [vmem:[%s3 + $0x8] sm:$0xff]
        %v654 = vld [vmem:[%s3 + $0x10] sm:$0xff]
        %v655 = vld [vmem:[%s3 + $0x18] sm:$0xff]
        %v656 = vld [vmem:[%s3 + $0x20] sm:$0xff]
        %v657 = vld [vmem:[%s3 + $0x28] sm:$0xff]
        %659 = vset.pattern.permute.xlu0 0
        %660 = vperm.xlu0 %659, %v652
        %v661 = vpop.permute.xlu0 %660
        %664 = vset.pattern.permute.xlu0 0
        %665 = vperm.xlu0 %664, %v653
        %v666 = vpop.permute.xlu0 %665
        %669 = vset.pattern.permute.xlu0 0
        %670 = vperm.xlu0 %669, %v654
        %v671 = vpop.permute.xlu0 %670
        %674 = vset.pattern.permute.xlu0 0
        %675 = vperm.xlu0 %674, %v655
        %v676 = vpop.permute.xlu0 %675
        %679 = vset.pattern.permute.xlu0 0
        %680 = vperm.xlu0 %679, %v656
        %v681 = vpop.permute.xlu0 %680
        %684 = vset.pattern.permute.xlu0 0
        %685 = vperm.xlu0 %684, %v657
        %v686 = vpop.permute.xlu0 %685
        %v688 = vmul.f32 %v640, %v661
        %v689 = vmul.f32 %v641, %v661
        %v690 = vmul.f32 %v642, %v666
        %v691 = vmul.f32 %v643, %v666
        %v692 = vmul.f32 %v644, %v671
        %v693 = vmul.f32 %v645, %v671
        %v694 = vmul.f32 %v646, %v676
        %v695 = vmul.f32 %v647, %v676
        %v696 = vmul.f32 %v648, %v681
        %v697 = vmul.f32 %v649, %v681
        %v698 = vmul.f32 %v650, %v686
        %v699 = vmul.f32 %v651, %v686
        %v700 = vadd.f32 %v688, 0.0
        %v701 = vadd.f32 %v689, 0.0
        %v702 = vadd.f32 %v690, 0.0
        %v703 = vadd.f32 %v691, 0.0
        %v704 = vadd.f32 %v692, 0.0
        %v705 = vadd.f32 %v693, 0.0
        %v706 = vadd.f32 %v694, 0.0
        %v707 = vadd.f32 %v695, 0.0
        %v708 = vadd.f32 %v696, 0.0
        %v709 = vadd.f32 %v697, 0.0
        %v710 = vadd.f32 %v698, 0.0
        %v711 = vadd.f32 %v699, 0.0
        %712 = vset.pattern.permute.xlu0 1
        %713 = vperm.xlu0 %712, %v652
        %v714 = vpop.permute.xlu0 %713
        %716 = vset.pattern.permute.xlu0 1
        %717 = vperm.xlu0 %716, %v653
        %v718 = vpop.permute.xlu0 %717
        %720 = vset.pattern.permute.xlu0 1
        %721 = vperm.xlu0 %720, %v654
        %v722 = vpop.permute.xlu0 %721
        %724 = vset.pattern.permute.xlu0 1
        %725 = vperm.xlu0 %724, %v655
        %v726 = vpop.permute.xlu0 %725
        %728 = vset.pattern.permute.xlu0 1
        %729 = vperm.xlu0 %728, %v656
        %v730 = vpop.permute.xlu0 %729
        %732 = vset.pattern.permute.xlu0 1
        %733 = vperm.xlu0 %732, %v657
        %v734 = vpop.permute.xlu0 %733
        %v736 = vmul.f32 %v539, %v714
        %v737 = vmul.f32 %v540, %v714
        %v738 = vmul.f32 %v541, %v714
        %v739 = vmul.f32 %v542, %v718
        %v740 = vmul.f32 %v543, %v718
        %v741 = vmul.f32 %v544, %v718
        %v742 = vmul.f32 %v545, %v722
        %v743 = vmul.f32 %v546, %v722
        %v744 = vmul.f32 %v547, %v722
        %v745 = vmul.f32 %v548, %v726
        %v746 = vmul.f32 %v549, %v726
        %v747 = vmul.f32 %v550, %v726
        %v748 = vmul.f32 %v551, %v730
        %v749 = vmul.f32 %v552, %v730
        %v750 = vmul.f32 %v553, %v730
        %v751 = vmul.f32 %v554, %v734
        %v752 = vmul.f32 %v555, %v734
        %v753 = vmul.f32 %v556, %v734
        %772 = vrot.lane.b32.xlu0 %v736, 16
        %v773 = vpop.permute.xlu0 %772
        %774 = vrot.lane.b32.xlu0 %v737, 16
        %v775 = vpop.permute.xlu0 %774
        %776 = vrot.lane.b32.xlu0 %v738, 16
        %v777 = vpop.permute.xlu0 %776
        %778 = vrot.lane.b32.xlu0 %v739, 16
        %v779 = vpop.permute.xlu0 %778
        %780 = vrot.lane.b32.xlu0 %v740, 16
        %v781 = vpop.permute.xlu0 %780
        %782 = vrot.lane.b32.xlu0 %v741, 16
        %v783 = vpop.permute.xlu0 %782
        %784 = vrot.lane.b32.xlu0 %v742, 16
        %v785 = vpop.permute.xlu0 %784
        %786 = vrot.lane.b32.xlu0 %v743, 16
        %v787 = vpop.permute.xlu0 %786
        %788 = vrot.lane.b32.xlu0 %v744, 16
        %v789 = vpop.permute.xlu0 %788
        %790 = vrot.lane.b32.xlu0 %v745, 16
        %v791 = vpop.permute.xlu0 %790
        %792 = vrot.lane.b32.xlu0 %v746, 16
        %v793 = vpop.permute.xlu0 %792
        %794 = vrot.lane.b32.xlu0 %v747, 16
        %v795 = vpop.permute.xlu0 %794
        %796 = vrot.lane.b32.xlu0 %v748, 16
        %v797 = vpop.permute.xlu0 %796
        %798 = vrot.lane.b32.xlu0 %v749, 16
        %v799 = vpop.permute.xlu0 %798
        %800 = vrot.lane.b32.xlu0 %v750, 16
        %v801 = vpop.permute.xlu0 %800
        %802 = vrot.lane.b32.xlu0 %v751, 16
        %v803 = vpop.permute.xlu0 %802
        %804 = vrot.lane.b32.xlu0 %v752, 16
        %v805 = vpop.permute.xlu0 %804
        %806 = vrot.lane.b32.xlu0 %v753, 16
        %v807 = vpop.permute.xlu0 %806
        %v808 = vsel %vm364, %v773, %v775
        %v809 = vsel %vm364, %v775, %v777
        %v810 = vsel %vm364, %v779, %v781
        %v811 = vsel %vm364, %v781, %v783
        %v812 = vsel %vm364, %v785, %v787
        %v813 = vsel %vm364, %v787, %v789
        %v814 = vsel %vm364, %v791, %v793
        %v815 = vsel %vm364, %v793, %v795
        %v816 = vsel %vm364, %v797, %v799
        %v817 = vsel %vm364, %v799, %v801
        %v818 = vsel %vm364, %v803, %v805
        %v819 = vsel %vm364, %v805, %v807
        %v832 = vadd.f32 %v700, %v808
        %v833 = vadd.f32 %v701, %v809
        %v834 = vadd.f32 %v702, %v810
        %v835 = vadd.f32 %v703, %v811
        %v836 = vadd.f32 %v704, %v812
        %v837 = vadd.f32 %v705, %v813
        %v838 = vadd.f32 %v706, %v814
        %v839 = vadd.f32 %v707, %v815
        %v840 = vadd.f32 %v708, %v816
        %v841 = vadd.f32 %v709, %v817
        %v842 = vadd.f32 %v710, %v818
        %v843 = vadd.f32 %v711, %v819
        %v844 = vsel %vm537, 1, 0
        %v845 = vsel %vm538, 1, 0
        %vm846 = vcmp.eq.s32.totalorder %v844, 1
        %vm847 = vcmp.eq.s32.totalorder %v845, 1
        %848 = vrot.lane.b32.xlu0 %v539, 15
        %v849 = vpop.permute.xlu0 %848
        %850 = vrot.lane.b32.xlu0 %v540, 15
        %v851 = vpop.permute.xlu0 %850
        %852 = vrot.lane.b32.xlu0 %v541, 15
        %v853 = vpop.permute.xlu0 %852
        %854 = vrot.lane.b32.xlu0 %v542, 15
        %v855 = vpop.permute.xlu0 %854
        %856 = vrot.lane.b32.xlu0 %v543, 15
        %v857 = vpop.permute.xlu0 %856
        %858 = vrot.lane.b32.xlu0 %v544, 15
        %v859 = vpop.permute.xlu0 %858
        %860 = vrot.lane.b32.xlu0 %v545, 15
        %v861 = vpop.permute.xlu0 %860
        %862 = vrot.lane.b32.xlu0 %v546, 15
        %v863 = vpop.permute.xlu0 %862
        %864 = vrot.lane.b32.xlu0 %v547, 15
        %v865 = vpop.permute.xlu0 %864
        %866 = vrot.lane.b32.xlu0 %v548, 15
        %v867 = vpop.permute.xlu0 %866
        %868 = vrot.lane.b32.xlu0 %v549, 15
        %v869 = vpop.permute.xlu0 %868
        %870 = vrot.lane.b32.xlu0 %v550, 15
        %v871 = vpop.permute.xlu0 %870
        %872 = vrot.lane.b32.xlu0 %v551, 15
        %v873 = vpop.permute.xlu0 %872
        %874 = vrot.lane.b32.xlu0 %v552, 15
        %v875 = vpop.permute.xlu0 %874
        %876 = vrot.lane.b32.xlu0 %v553, 15
        %v877 = vpop.permute.xlu0 %876
        %878 = vrot.lane.b32.xlu0 %v554, 15
        %v879 = vpop.permute.xlu0 %878
        %880 = vrot.lane.b32.xlu0 %v555, 15
        %v881 = vpop.permute.xlu0 %880
        %882 = vrot.lane.b32.xlu0 %v556, 15
        %v883 = vpop.permute.xlu0 %882
        %vm884 = vcmask 121856
        %v885 = vsel %vm884, %v849, %v851
        %v886 = vsel %vm884, %v851, %v853
        %v887 = vsel %vm884, %v855, %v857
        %v888 = vsel %vm884, %v857, %v859
        %v889 = vsel %vm884, %v861, %v863
        %v890 = vsel %vm884, %v863, %v865
        %v891 = vsel %vm884, %v867, %v869
        %v892 = vsel %vm884, %v869, %v871
        %v893 = vsel %vm884, %v873, %v875
        %v894 = vsel %vm884, %v875, %v877
        %v895 = vsel %vm884, %v879, %v881
        %v896 = vsel %vm884, %v881, %v883
        %v909 = vsel %vm846, %v885, 0.0
        %v910 = vsel %vm847, %v886, 0.0
        %v911 = vsel %vm846, %v887, 0.0
        %v912 = vsel %vm847, %v888, 0.0
        %v913 = vsel %vm846, %v889, 0.0
        %v914 = vsel %vm847, %v890, 0.0
        %v915 = vsel %vm846, %v891, 0.0
        %v916 = vsel %vm847, %v892, 0.0
        %v917 = vsel %vm846, %v893, 0.0
        %v918 = vsel %vm847, %v894, 0.0
        %v919 = vsel %vm846, %v895, 0.0
        %v920 = vsel %vm847, %v896, 0.0
        %921 = vset.pattern.permute.xlu0 2
        %922 = vperm.xlu0 %921, %v652
        %v923 = vpop.permute.xlu0 %922
        %925 = vset.pattern.permute.xlu0 2
        %926 = vperm.xlu0 %925, %v653
        %v927 = vpop.permute.xlu0 %926
        %929 = vset.pattern.permute.xlu0 2
        %930 = vperm.xlu0 %929, %v654
        %v931 = vpop.permute.xlu0 %930
        %933 = vset.pattern.permute.xlu0 2
        %934 = vperm.xlu0 %933, %v655
        %v935 = vpop.permute.xlu0 %934
        %937 = vset.pattern.permute.xlu0 2
        %938 = vperm.xlu0 %937, %v656
        %v939 = vpop.permute.xlu0 %938
        %941 = vset.pattern.permute.xlu0 2
        %942 = vperm.xlu0 %941, %v657
        %v943 = vpop.permute.xlu0 %942
        %v945 = vmul.f32 %v909, %v923
        %v946 = vmul.f32 %v910, %v923
        %v947 = vmul.f32 %v911, %v927
        %v948 = vmul.f32 %v912, %v927
        %v949 = vmul.f32 %v913, %v931
        %v950 = vmul.f32 %v914, %v931
        %v951 = vmul.f32 %v915, %v935
        %v952 = vmul.f32 %v916, %v935
        %v953 = vmul.f32 %v917, %v939
        %v954 = vmul.f32 %v918, %v939
        %v955 = vmul.f32 %v919, %v943
        %v956 = vmul.f32 %v920, %v943
        %v957 = vadd.f32 %v832, %v945
        %v958 = vadd.f32 %v833, %v946
        %v959 = vadd.f32 %v834, %v947
        %v960 = vadd.f32 %v835, %v948
        %v961 = vadd.f32 %v836, %v949
        %v962 = vadd.f32 %v837, %v950
        %v963 = vadd.f32 %v838, %v951
        %v964 = vadd.f32 %v839, %v952
        %v965 = vadd.f32 %v840, %v953
        %v966 = vadd.f32 %v841, %v954
        %v967 = vadd.f32 %v842, %v955
        %v968 = vadd.f32 %v843, %v956
        %969 = vrot.lane.b32.xlu0 %v539, 1
        %v970 = vpop.permute.xlu0 %969
        %971 = vrot.lane.b32.xlu0 %v540, 1
        %v972 = vpop.permute.xlu0 %971
        %973 = vrot.lane.b32.xlu0 %v541, 1
        %v974 = vpop.permute.xlu0 %973
        %975 = vrot.lane.b32.xlu0 %v542, 1
        %v976 = vpop.permute.xlu0 %975
        %977 = vrot.lane.b32.xlu0 %v543, 1
        %v978 = vpop.permute.xlu0 %977
        %979 = vrot.lane.b32.xlu0 %v544, 1
        %v980 = vpop.permute.xlu0 %979
        %981 = vrot.lane.b32.xlu0 %v545, 1
        %v982 = vpop.permute.xlu0 %981
        %983 = vrot.lane.b32.xlu0 %v546, 1
        %v984 = vpop.permute.xlu0 %983
        %985 = vrot.lane.b32.xlu0 %v547, 1
        %v986 = vpop.permute.xlu0 %985
        %987 = vrot.lane.b32.xlu0 %v548, 1
        %v988 = vpop.permute.xlu0 %987
        %989 = vrot.lane.b32.xlu0 %v549, 1
        %v990 = vpop.permute.xlu0 %989
        %991 = vrot.lane.b32.xlu0 %v550, 1
        %v992 = vpop.permute.xlu0 %991
        %993 = vrot.lane.b32.xlu0 %v551, 1
        %v994 = vpop.permute.xlu0 %993
        %995 = vrot.lane.b32.xlu0 %v552, 1
        %v996 = vpop.permute.xlu0 %995
        %997 = vrot.lane.b32.xlu0 %v553, 1
        %v998 = vpop.permute.xlu0 %997
        %999 = vrot.lane.b32.xlu0 %v554, 1
        %v1000 = vpop.permute.xlu0 %999
        %1001 = vrot.lane.b32.xlu0 %v555, 1
        %v1002 = vpop.permute.xlu0 %1001
        %1003 = vrot.lane.b32.xlu0 %v556, 1
        %v1004 = vpop.permute.xlu0 %1003
        %vm1005 = vcmask 7168
        %v1006 = vsel %vm1005, %v970, %v972
        %v1007 = vsel %vm1005, %v972, %v974
        %v1008 = vsel %vm1005, %v976, %v978
        %v1009 = vsel %vm1005, %v978, %v980
        %v1010 = vsel %vm1005, %v982, %v984
        %v1011 = vsel %vm1005, %v984, %v986
        %v1012 = vsel %vm1005, %v988, %v990
        %v1013 = vsel %vm1005, %v990, %v992
        %v1014 = vsel %vm1005, %v994, %v996
        %v1015 = vsel %vm1005, %v996, %v998
        %v1016 = vsel %vm1005, %v1000, %v1002
        %v1017 = vsel %vm1005, %v1002, %v1004
        %v1030 = vsel %vm559, %v1006, 0.0
        %v1031 = vsel %vm560, %v1007, 0.0
        %v1032 = vsel %vm559, %v1008, 0.0
        %v1033 = vsel %vm560, %v1009, 0.0
        %v1034 = vsel %vm559, %v1010, 0.0
        %v1035 = vsel %vm560, %v1011, 0.0
        %v1036 = vsel %vm559, %v1012, 0.0
        %v1037 = vsel %vm560, %v1013, 0.0
        %v1038 = vsel %vm559, %v1014, 0.0
        %v1039 = vsel %vm560, %v1015, 0.0
        %v1040 = vsel %vm559, %v1016, 0.0
        %v1041 = vsel %vm560, %v1017, 0.0
        %1042 = vset.pattern.permute.xlu0 3
        %1043 = vperm.xlu0 %1042, %v652
        %v1044 = vpop.permute.xlu0 %1043
        %1046 = vset.pattern.permute.xlu0 3
        %1047 = vperm.xlu0 %1046, %v653
        %v1048 = vpop.permute.xlu0 %1047
        %1050 = vset.pattern.permute.xlu0 3
        %1051 = vperm.xlu0 %1050, %v654
        %v1052 = vpop.permute.xlu0 %1051
        %1054 = vset.pattern.permute.xlu0 3
        %1055 = vperm.xlu0 %1054, %v655
        %v1056 = vpop.permute.xlu0 %1055
        %1058 = vset.pattern.permute.xlu0 3
        %1059 = vperm.xlu0 %1058, %v656
        %v1060 = vpop.permute.xlu0 %1059
        %1062 = vset.pattern.permute.xlu0 3
        %1063 = vperm.xlu0 %1062, %v657
        %v1064 = vpop.permute.xlu0 %1063
        %v1066 = vmul.f32 %v1030, %v1044
        %v1067 = vmul.f32 %v1031, %v1044
        %v1068 = vmul.f32 %v1032, %v1048
        %v1069 = vmul.f32 %v1033, %v1048
        %v1070 = vmul.f32 %v1034, %v1052
        %v1071 = vmul.f32 %v1035, %v1052
        %v1072 = vmul.f32 %v1036, %v1056
        %v1073 = vmul.f32 %v1037, %v1056
        %v1074 = vmul.f32 %v1038, %v1060
        %v1075 = vmul.f32 %v1039, %v1060
        %v1076 = vmul.f32 %v1040, %v1064
        %v1077 = vmul.f32 %v1041, %v1064
        %v1078 = vadd.f32 %v957, %v1066
        %v1079 = vadd.f32 %v958, %v1067
        %v1080 = vadd.f32 %v959, %v1068
        %v1081 = vadd.f32 %v960, %v1069
        %v1082 = vadd.f32 %v961, %v1070
        %v1083 = vadd.f32 %v962, %v1071
        %v1084 = vadd.f32 %v963, %v1072
        %v1085 = vadd.f32 %v964, %v1073
        %v1086 = vadd.f32 %v965, %v1074
        %v1087 = vadd.f32 %v966, %v1075
        %v1088 = vadd.f32 %v967, %v1076
        %v1089 = vadd.f32 %v968, %v1077
        %1090 = vset.pattern.permute.xlu0 4
        %1091 = vperm.xlu0 %1090, %v652
        %v1092 = vpop.permute.xlu0 %1091
        %1094 = vset.pattern.permute.xlu0 4
        %1095 = vperm.xlu0 %1094, %v653
        %v1096 = vpop.permute.xlu0 %1095
        %1098 = vset.pattern.permute.xlu0 4
        %1099 = vperm.xlu0 %1098, %v654
        %v1100 = vpop.permute.xlu0 %1099
        %1102 = vset.pattern.permute.xlu0 4
        %1103 = vperm.xlu0 %1102, %v655
        %v1104 = vpop.permute.xlu0 %1103
        %1106 = vset.pattern.permute.xlu0 4
        %1107 = vperm.xlu0 %1106, %v656
        %v1108 = vpop.permute.xlu0 %1107
        %1110 = vset.pattern.permute.xlu0 4
        %1111 = vperm.xlu0 %1110, %v657
        %v1112 = vpop.permute.xlu0 %1111
        %v1114 = vmul.f32 %v540, %v1092
        %v1115 = vmul.f32 %v541, %v1092
        %v1116 = vmul.f32 %v543, %v1096
        %v1117 = vmul.f32 %v544, %v1096
        %v1118 = vmul.f32 %v546, %v1100
        %v1119 = vmul.f32 %v547, %v1100
        %v1120 = vmul.f32 %v549, %v1104
        %v1121 = vmul.f32 %v550, %v1104
        %v1122 = vmul.f32 %v552, %v1108
        %v1123 = vmul.f32 %v553, %v1108
        %v1124 = vmul.f32 %v555, %v1112
        %v1125 = vmul.f32 %v556, %v1112
        %v1126 = vadd.f32 %v1078, %v1114
        %v1127 = vadd.f32 %v1079, %v1115
        %v1128 = vadd.f32 %v1080, %v1116
        %v1129 = vadd.f32 %v1081, %v1117
        %v1130 = vadd.f32 %v1082, %v1118
        %v1131 = vadd.f32 %v1083, %v1119
        %v1132 = vadd.f32 %v1084, %v1120
        %v1133 = vadd.f32 %v1085, %v1121
        %v1134 = vadd.f32 %v1086, %v1122
        %v1135 = vadd.f32 %v1087, %v1123
        %v1136 = vadd.f32 %v1088, %v1124
        %v1137 = vadd.f32 %v1089, %v1125
        %v1138 = vld [vmem:[#allocation2 + $0x8] sm:$0xff]
        %v1139 = vld [vmem:[#allocation2 + $0x10] sm:$0xff]
        %v1140 = vld [vmem:[#allocation2 + $0x18] sm:$0xff]
        %v1141 = vld [vmem:[#allocation2 + $0x28] sm:$0xff]
        %v1142 = vld [vmem:[#allocation2 + $0x30] sm:$0xff]
        %v1143 = vld [vmem:[#allocation2 + $0x38] sm:$0xff]
        %v1144 = vld [vmem:[#allocation2 + $0x48] sm:$0xff]
        %v1145 = vld [vmem:[#allocation2 + $0x50] sm:$0xff]
        %v1146 = vld [vmem:[#allocation2 + $0x58] sm:$0xff]
        %v1147 = vld [vmem:[#allocation2 + $0x68] sm:$0xff]
        %v1148 = vld [vmem:[#allocation2 + $0x70] sm:$0xff]
        %v1149 = vld [vmem:[#allocation2 + $0x78] sm:$0xff]
        %v1150 = vld [vmem:[#allocation2 + $0x88] sm:$0xff]
        %v1151 = vld [vmem:[#allocation2 + $0x90] sm:$0xff]
        %v1152 = vld [vmem:[#allocation2 + $0x98] sm:$0xff]
        %v1153 = vld [vmem:[#allocation2 + $0xa8] sm:$0xff]
        %v1154 = vld [vmem:[#allocation2 + $0xb0] sm:$0xff]
        %v1155 = vld [vmem:[#allocation2 + $0xb8] sm:$0xff]
        %1174 = vrot.lane.b32.xlu0 %v1138, 127
        %v1175 = vpop.permute.xlu0 %1174
        %1176 = vrot.lane.b32.xlu0 %v1139, 127
        %v1177 = vpop.permute.xlu0 %1176
        %1178 = vrot.lane.b32.xlu0 %v1140, 127
        %v1179 = vpop.permute.xlu0 %1178
        %1180 = vrot.lane.b32.xlu0 %v1141, 127
        %v1181 = vpop.permute.xlu0 %1180
        %1182 = vrot.lane.b32.xlu0 %v1142, 127
        %v1183 = vpop.permute.xlu0 %1182
        %1184 = vrot.lane.b32.xlu0 %v1143, 127
        %v1185 = vpop.permute.xlu0 %1184
        %1186 = vrot.lane.b32.xlu0 %v1144, 127
        %v1187 = vpop.permute.xlu0 %1186
        %1188 = vrot.lane.b32.xlu0 %v1145, 127
        %v1189 = vpop.permute.xlu0 %1188
        %1190 = vrot.lane.b32.xlu0 %v1146, 127
        %v1191 = vpop.permute.xlu0 %1190
        %1192 = vrot.lane.b32.xlu0 %v1147, 127
        %v1193 = vpop.permute.xlu0 %1192
        %1194 = vrot.lane.b32.xlu0 %v1148, 127
        %v1195 = vpop.permute.xlu0 %1194
        %1196 = vrot.lane.b32.xlu0 %v1149, 127
        %v1197 = vpop.permute.xlu0 %1196
        %1198 = vrot.lane.b32.xlu0 %v1150, 127
        %v1199 = vpop.permute.xlu0 %1198
        %1200 = vrot.lane.b32.xlu0 %v1151, 127
        %v1201 = vpop.permute.xlu0 %1200
        %1202 = vrot.lane.b32.xlu0 %v1152, 127
        %v1203 = vpop.permute.xlu0 %1202
        %1204 = vrot.lane.b32.xlu0 %v1153, 127
        %v1205 = vpop.permute.xlu0 %1204
        %1206 = vrot.lane.b32.xlu0 %v1154, 127
        %v1207 = vpop.permute.xlu0 %1206
        %1208 = vrot.lane.b32.xlu0 %v1155, 127
        %v1209 = vpop.permute.xlu0 %1208
        %vm1210 = vcmask 1039360
        %v1211 = vsel %vm1210, %v1175, %v1177
        %v1212 = vsel %vm1210, %v1177, %v1179
        %v1213 = vsel %vm1210, %v1181, %v1183
        %v1214 = vsel %vm1210, %v1183, %v1185
        %v1215 = vsel %vm1210, %v1187, %v1189
        %v1216 = vsel %vm1210, %v1189, %v1191
        %v1217 = vsel %vm1210, %v1193, %v1195
        %v1218 = vsel %vm1210, %v1195, %v1197
        %v1219 = vsel %vm1210, %v1199, %v1201
        %v1220 = vsel %vm1210, %v1201, %v1203
        %v1221 = vsel %vm1210, %v1205, %v1207
        %v1222 = vsel %vm1210, %v1207, %v1209
        %v1235 = vsel %vm846, %v1211, 0.0
        %v1236 = vsel %vm847, %v1212, 0.0
        %v1237 = vsel %vm846, %v1213, 0.0
        %v1238 = vsel %vm847, %v1214, 0.0
        %v1239 = vsel %vm846, %v1215, 0.0
        %v1240 = vsel %vm847, %v1216, 0.0
        %v1241 = vsel %vm846, %v1217, 0.0
        %v1242 = vsel %vm847, %v1218, 0.0
        %v1243 = vsel %vm846, %v1219, 0.0
        %v1244 = vsel %vm847, %v1220, 0.0
        %v1245 = vsel %vm846, %v1221, 0.0
        %v1246 = vsel %vm847, %v1222, 0.0
        %1247 = vset.pattern.permute.xlu0 5
        %1248 = vperm.xlu0 %1247, %v652
        %v1249 = vpop.permute.xlu0 %1248
        %1251 = vset.pattern.permute.xlu0 5
        %1252 = vperm.xlu0 %1251, %v653
        %v1253 = vpop.permute.xlu0 %1252
        %1255 = vset.pattern.permute.xlu0 5
        %1256 = vperm.xlu0 %1255, %v654
        %v1257 = vpop.permute.xlu0 %1256
        %1259 = vset.pattern.permute.xlu0 5
        %1260 = vperm.xlu0 %1259, %v655
        %v1261 = vpop.permute.xlu0 %1260
        %1263 = vset.pattern.permute.xlu0 5
        %1264 = vperm.xlu0 %1263, %v656
        %v1265 = vpop.permute.xlu0 %1264
        %1267 = vset.pattern.permute.xlu0 5
        %1268 = vperm.xlu0 %1267, %v657
        %v1269 = vpop.permute.xlu0 %1268
        %v1271 = vmul.f32 %v1235, %v1249
        %v1272 = vmul.f32 %v1236, %v1249
        %v1273 = vmul.f32 %v1237, %v1253
        %v1274 = vmul.f32 %v1238, %v1253
        %v1275 = vmul.f32 %v1239, %v1257
        %v1276 = vmul.f32 %v1240, %v1257
        %v1277 = vmul.f32 %v1241, %v1261
        %v1278 = vmul.f32 %v1242, %v1261
        %v1279 = vmul.f32 %v1243, %v1265
        %v1280 = vmul.f32 %v1244, %v1265
        %v1281 = vmul.f32 %v1245, %v1269
        %v1282 = vmul.f32 %v1246, %v1269
        %v1283 = vadd.f32 %v1126, %v1271
        %v1284 = vadd.f32 %v1127, %v1272
        %v1285 = vadd.f32 %v1128, %v1273
        %v1286 = vadd.f32 %v1129, %v1274
        %v1287 = vadd.f32 %v1130, %v1275
        %v1288 = vadd.f32 %v1131, %v1276
        %v1289 = vadd.f32 %v1132, %v1277
        %v1290 = vadd.f32 %v1133, %v1278
        %v1291 = vadd.f32 %v1134, %v1279
        %v1292 = vadd.f32 %v1135, %v1280
        %v1293 = vadd.f32 %v1136, %v1281
        %v1294 = vadd.f32 %v1137, %v1282
        %1295 = vrot.lane.b32.xlu0 %v1138, 113
        %v1296 = vpop.permute.xlu0 %1295
        %1297 = vrot.lane.b32.xlu0 %v1139, 113
        %v1298 = vpop.permute.xlu0 %1297
        %1299 = vrot.lane.b32.xlu0 %v1140, 113
        %v1300 = vpop.permute.xlu0 %1299
        %1301 = vrot.lane.b32.xlu0 %v1141, 113
        %v1302 = vpop.permute.xlu0 %1301
        %1303 = vrot.lane.b32.xlu0 %v1142, 113
        %v1304 = vpop.permute.xlu0 %1303
        %1305 = vrot.lane.b32.xlu0 %v1143, 113
        %v1306 = vpop.permute.xlu0 %1305
        %1307 = vrot.lane.b32.xlu0 %v1144, 113
        %v1308 = vpop.permute.xlu0 %1307
        %1309 = vrot.lane.b32.xlu0 %v1145, 113
        %v1310 = vpop.permute.xlu0 %1309
        %1311 = vrot.lane.b32.xlu0 %v1146, 113
        %v1312 = vpop.permute.xlu0 %1311
        %1313 = vrot.lane.b32.xlu0 %v1147, 113
        %v1314 = vpop.permute.xlu0 %1313
        %1315 = vrot.lane.b32.xlu0 %v1148, 113
        %v1316 = vpop.permute.xlu0 %1315
        %1317 = vrot.lane.b32.xlu0 %v1149, 113
        %v1318 = vpop.permute.xlu0 %1317
        %1319 = vrot.lane.b32.xlu0 %v1150, 113
        %v1320 = vpop.permute.xlu0 %1319
        %1321 = vrot.lane.b32.xlu0 %v1151, 113
        %v1322 = vpop.permute.xlu0 %1321
        %1323 = vrot.lane.b32.xlu0 %v1152, 113
        %v1324 = vpop.permute.xlu0 %1323
        %1325 = vrot.lane.b32.xlu0 %v1153, 113
        %v1326 = vpop.permute.xlu0 %1325
        %1327 = vrot.lane.b32.xlu0 %v1154, 113
        %v1328 = vpop.permute.xlu0 %1327
        %1329 = vrot.lane.b32.xlu0 %v1155, 113
        %v1330 = vpop.permute.xlu0 %1329
        %vm1331 = vcmask 924672
        %v1332 = vsel %vm1331, %v1296, %v1298
        %v1333 = vsel %vm1331, %v1298, %v1300
        %v1334 = vsel %vm1331, %v1302, %v1304
        %v1335 = vsel %vm1331, %v1304, %v1306
        %v1336 = vsel %vm1331, %v1308, %v1310
        %v1337 = vsel %vm1331, %v1310, %v1312
        %v1338 = vsel %vm1331, %v1314, %v1316
        %v1339 = vsel %vm1331, %v1316, %v1318
        %v1340 = vsel %vm1331, %v1320, %v1322
        %v1341 = vsel %vm1331, %v1322, %v1324
        %v1342 = vsel %vm1331, %v1326, %v1328
        %v1343 = vsel %vm1331, %v1328, %v1330
        %v1356 = vsel %vm559, %v1332, 0.0
        %v1357 = vsel %vm560, %v1333, 0.0
        %v1358 = vsel %vm559, %v1334, 0.0
        %v1359 = vsel %vm560, %v1335, 0.0
        %v1360 = vsel %vm559, %v1336, 0.0
        %v1361 = vsel %vm560, %v1337, 0.0
        %v1362 = vsel %vm559, %v1338, 0.0
        %v1363 = vsel %vm560, %v1339, 0.0
        %v1364 = vsel %vm559, %v1340, 0.0
        %v1365 = vsel %vm560, %v1341, 0.0
        %v1366 = vsel %vm559, %v1342, 0.0
        %v1367 = vsel %vm560, %v1343, 0.0
        %1368 = vset.pattern.permute.xlu0 6
        %1369 = vperm.xlu0 %1368, %v652
        %v1370 = vpop.permute.xlu0 %1369
        %1372 = vset.pattern.permute.xlu0 6
        %1373 = vperm.xlu0 %1372, %v653
        %v1374 = vpop.permute.xlu0 %1373
        %1376 = vset.pattern.permute.xlu0 6
        %1377 = vperm.xlu0 %1376, %v654
        %v1378 = vpop.permute.xlu0 %1377
        %1380 = vset.pattern.permute.xlu0 6
        %1381 = vperm.xlu0 %1380, %v655
        %v1382 = vpop.permute.xlu0 %1381
        %1384 = vset.pattern.permute.xlu0 6
        %1385 = vperm.xlu0 %1384, %v656
        %v1386 = vpop.permute.xlu0 %1385
        %1388 = vset.pattern.permute.xlu0 6
        %1389 = vperm.xlu0 %1388, %v657
        %v1390 = vpop.permute.xlu0 %1389
        %v1392 = vmul.f32 %v1356, %v1370
        %v1393 = vmul.f32 %v1357, %v1370
        %v1394 = vmul.f32 %v1358, %v1374
        %v1395 = vmul.f32 %v1359, %v1374
        %v1396 = vmul.f32 %v1360, %v1378
        %v1397 = vmul.f32 %v1361, %v1378
        %v1398 = vmul.f32 %v1362, %v1382
        %v1399 = vmul.f32 %v1363, %v1382
        %v1400 = vmul.f32 %v1364, %v1386
        %v1401 = vmul.f32 %v1365, %v1386
        %v1402 = vmul.f32 %v1366, %v1390
        %v1403 = vmul.f32 %v1367, %v1390
        %v1404 = vadd.f32 %v1283, %v1392
        %v1405 = vadd.f32 %v1284, %v1393
        %v1406 = vadd.f32 %v1285, %v1394
        %v1407 = vadd.f32 %v1286, %v1395
        %v1408 = vadd.f32 %v1287, %v1396
        %v1409 = vadd.f32 %v1288, %v1397
        %v1410 = vadd.f32 %v1289, %v1398
        %v1411 = vadd.f32 %v1290, %v1399
        %v1412 = vadd.f32 %v1291, %v1400
        %v1413 = vadd.f32 %v1292, %v1401
        %v1414 = vadd.f32 %v1293, %v1402
        %v1415 = vadd.f32 %v1294, %v1403
        %1416 = vset.pattern.permute.xlu0 7
        %1417 = vperm.xlu0 %1416, %v652
        %v1418 = vpop.permute.xlu0 %1417
        %1420 = vset.pattern.permute.xlu0 7
        %1421 = vperm.xlu0 %1420, %v653
        %v1422 = vpop.permute.xlu0 %1421
        %1424 = vset.pattern.permute.xlu0 7
        %1425 = vperm.xlu0 %1424, %v654
        %v1426 = vpop.permute.xlu0 %1425
        %1428 = vset.pattern.permute.xlu0 7
        %1429 = vperm.xlu0 %1428, %v655
        %v1430 = vpop.permute.xlu0 %1429
        %1432 = vset.pattern.permute.xlu0 7
        %1433 = vperm.xlu0 %1432, %v656
        %v1434 = vpop.permute.xlu0 %1433
        %1436 = vset.pattern.permute.xlu0 7
        %1437 = vperm.xlu0 %1436, %v657
        %v1438 = vpop.permute.xlu0 %1437
        %v1440 = vmul.f32 %v1138, %v1418
        %v1441 = vmul.f32 %v1139, %v1418
        %v1442 = vmul.f32 %v1140, %v1418
        %v1443 = vmul.f32 %v1141, %v1422
        %v1444 = vmul.f32 %v1142, %v1422
        %v1445 = vmul.f32 %v1143, %v1422
        %v1446 = vmul.f32 %v1144, %v1426
        %v1447 = vmul.f32 %v1145, %v1426
        %v1448 = vmul.f32 %v1146, %v1426
        %v1449 = vmul.f32 %v1147, %v1430
        %v1450 = vmul.f32 %v1148, %v1430
        %v1451 = vmul.f32 %v1149, %v1430
        %v1452 = vmul.f32 %v1150, %v1434
        %v1453 = vmul.f32 %v1151, %v1434
        %v1454 = vmul.f32 %v1152, %v1434
        %v1455 = vmul.f32 %v1153, %v1438
        %v1456 = vmul.f32 %v1154, %v1438
        %v1457 = vmul.f32 %v1155, %v1438
        %1476 = vrot.lane.b32.xlu0 %v1440, 112
        %v1477 = vpop.permute.xlu0 %1476
        %1478 = vrot.lane.b32.xlu0 %v1441, 112
        %v1479 = vpop.permute.xlu0 %1478
        %1480 = vrot.lane.b32.xlu0 %v1442, 112
        %v1481 = vpop.permute.xlu0 %1480
        %1482 = vrot.lane.b32.xlu0 %v1443, 112
        %v1483 = vpop.permute.xlu0 %1482
        %1484 = vrot.lane.b32.xlu0 %v1444, 112
        %v1485 = vpop.permute.xlu0 %1484
        %1486 = vrot.lane.b32.xlu0 %v1445, 112
        %v1487 = vpop.permute.xlu0 %1486
        %1488 = vrot.lane.b32.xlu0 %v1446, 112
        %v1489 = vpop.permute.xlu0 %1488
        %1490 = vrot.lane.b32.xlu0 %v1447, 112
        %v1491 = vpop.permute.xlu0 %1490
        %1492 = vrot.lane.b32.xlu0 %v1448, 112
        %v1493 = vpop.permute.xlu0 %1492
        %1494 = vrot.lane.b32.xlu0 %v1449, 112
        %v1495 = vpop.permute.xlu0 %1494
        %1496 = vrot.lane.b32.xlu0 %v1450, 112
        %v1497 = vpop.permute.xlu0 %1496
        %1498 = vrot.lane.b32.xlu0 %v1451, 112
        %v1499 = vpop.permute.xlu0 %1498
        %1500 = vrot.lane.b32.xlu0 %v1452, 112
        %v1501 = vpop.permute.xlu0 %1500
        %1502 = vrot.lane.b32.xlu0 %v1453, 112
        %v1503 = vpop.permute.xlu0 %1502
        %1504 = vrot.lane.b32.xlu0 %v1454, 112
        %v1505 = vpop.permute.xlu0 %1504
        %1506 = vrot.lane.b32.xlu0 %v1455, 112
        %v1507 = vpop.permute.xlu0 %1506
        %1508 = vrot.lane.b32.xlu0 %v1456, 112
        %v1509 = vpop.permute.xlu0 %1508
        %1510 = vrot.lane.b32.xlu0 %v1457, 112
        %v1511 = vpop.permute.xlu0 %1510
        %vm1512 = vcmask 916480
        %v1513 = vsel %vm1512, %v1477, %v1479
        %v1514 = vsel %vm1512, %v1479, %v1481
        %v1515 = vsel %vm1512, %v1483, %v1485
        %v1516 = vsel %vm1512, %v1485, %v1487
        %v1517 = vsel %vm1512, %v1489, %v1491
        %v1518 = vsel %vm1512, %v1491, %v1493
        %v1519 = vsel %vm1512, %v1495, %v1497
        %v1520 = vsel %vm1512, %v1497, %v1499
        %v1521 = vsel %vm1512, %v1501, %v1503
        %v1522 = vsel %vm1512, %v1503, %v1505
        %v1523 = vsel %vm1512, %v1507, %v1509
        %v1524 = vsel %vm1512, %v1509, %v1511
        %v1537 = vadd.f32 %v1404, %v1513
        %v1538 = vadd.f32 %v1405, %v1514
        %v1539 = vadd.f32 %v1406, %v1515
        %v1540 = vadd.f32 %v1407, %v1516
        %v1541 = vadd.f32 %v1408, %v1517
        %v1542 = vadd.f32 %v1409, %v1518
        %v1543 = vadd.f32 %v1410, %v1519
        %v1544 = vadd.f32 %v1411, %v1520
        %v1545 = vadd.f32 %v1412, %v1521
        %v1546 = vadd.f32 %v1413, %v1522
        %v1547 = vadd.f32 %v1414, %v1523
        %v1548 = vadd.f32 %v1415, %v1524
        %1549 = vrot.lane.b32.xlu0 %v1138, 111
        %v1550 = vpop.permute.xlu0 %1549
        %1551 = vrot.lane.b32.xlu0 %v1139, 111
        %v1552 = vpop.permute.xlu0 %1551
        %1553 = vrot.lane.b32.xlu0 %v1140, 111
        %v1554 = vpop.permute.xlu0 %1553
        %1555 = vrot.lane.b32.xlu0 %v1141, 111
        %v1556 = vpop.permute.xlu0 %1555
        %1557 = vrot.lane.b32.xlu0 %v1142, 111
        %v1558 = vpop.permute.xlu0 %1557
        %1559 = vrot.lane.b32.xlu0 %v1143, 111
        %v1560 = vpop.permute.xlu0 %1559
        %1561 = vrot.lane.b32.xlu0 %v1144, 111
        %v1562 = vpop.permute.xlu0 %1561
        %1563 = vrot.lane.b32.xlu0 %v1145, 111
        %v1564 = vpop.permute.xlu0 %1563
        %1565 = vrot.lane.b32.xlu0 %v1146, 111
        %v1566 = vpop.permute.xlu0 %1565
        %1567 = vrot.lane.b32.xlu0 %v1147, 111
        %v1568 = vpop.permute.xlu0 %1567
        %1569 = vrot.lane.b32.xlu0 %v1148, 111
        %v1570 = vpop.permute.xlu0 %1569
        %1571 = vrot.lane.b32.xlu0 %v1149, 111
        %v1572 = vpop.permute.xlu0 %1571
        %1573 = vrot.lane.b32.xlu0 %v1150, 111
        %v1574 = vpop.permute.xlu0 %1573
        %1575 = vrot.lane.b32.xlu0 %v1151, 111
        %v1576 = vpop.permute.xlu0 %1575
        %1577 = vrot.lane.b32.xlu0 %v1152, 111
        %v1578 = vpop.permute.xlu0 %1577
        %1579 = vrot.lane.b32.xlu0 %v1153, 111
        %v1580 = vpop.permute.xlu0 %1579
        %1581 = vrot.lane.b32.xlu0 %v1154, 111
        %v1582 = vpop.permute.xlu0 %1581
        %1583 = vrot.lane.b32.xlu0 %v1155, 111
        %v1584 = vpop.permute.xlu0 %1583
        %vm1585 = vcmask 908288
        %v1586 = vsel %vm1585, %v1550, %v1552
        %v1587 = vsel %vm1585, %v1552, %v1554
        %v1588 = vsel %vm1585, %v1556, %v1558
        %v1589 = vsel %vm1585, %v1558, %v1560
        %v1590 = vsel %vm1585, %v1562, %v1564
        %v1591 = vsel %vm1585, %v1564, %v1566
        %v1592 = vsel %vm1585, %v1568, %v1570
        %v1593 = vsel %vm1585, %v1570, %v1572
        %v1594 = vsel %vm1585, %v1574, %v1576
        %v1595 = vsel %vm1585, %v1576, %v1578
        %v1596 = vsel %vm1585, %v1580, %v1582
        %v1597 = vsel %vm1585, %v1582, %v1584
        %v1610 = vsel %vm846, %v1586, 0.0
        %v1611 = vsel %vm847, %v1587, 0.0
        %v1612 = vsel %vm846, %v1588, 0.0
        %v1613 = vsel %vm847, %v1589, 0.0
        %v1614 = vsel %vm846, %v1590, 0.0
        %v1615 = vsel %vm847, %v1591, 0.0
        %v1616 = vsel %vm846, %v1592, 0.0
        %v1617 = vsel %vm847, %v1593, 0.0
        %v1618 = vsel %vm846, %v1594, 0.0
        %v1619 = vsel %vm847, %v1595, 0.0
        %v1620 = vsel %vm846, %v1596, 0.0
        %v1621 = vsel %vm847, %v1597, 0.0
        %1622 = vset.pattern.permute.xlu0 8
        %1623 = vperm.xlu0 %1622, %v652
        %v1624 = vpop.permute.xlu0 %1623
        %1626 = vset.pattern.permute.xlu0 8
        %1627 = vperm.xlu0 %1626, %v653
        %v1628 = vpop.permute.xlu0 %1627
        %1630 = vset.pattern.permute.xlu0 8
        %1631 = vperm.xlu0 %1630, %v654
        %v1632 = vpop.permute.xlu0 %1631
        %1634 = vset.pattern.permute.xlu0 8
        %1635 = vperm.xlu0 %1634, %v655
        %v1636 = vpop.permute.xlu0 %1635
        %1638 = vset.pattern.permute.xlu0 8
        %1639 = vperm.xlu0 %1638, %v656
        %v1640 = vpop.permute.xlu0 %1639
        %1642 = vset.pattern.permute.xlu0 8
        %1643 = vperm.xlu0 %1642, %v657
        %v1644 = vpop.permute.xlu0 %1643
        %v1646 = vmul.f32 %v1610, %v1624
        %v1647 = vmul.f32 %v1611, %v1624
        %v1648 = vmul.f32 %v1612, %v1628
        %v1649 = vmul.f32 %v1613, %v1628
        %v1650 = vmul.f32 %v1614, %v1632
        %v1651 = vmul.f32 %v1615, %v1632
        %v1652 = vmul.f32 %v1616, %v1636
        %v1653 = vmul.f32 %v1617, %v1636
        %v1654 = vmul.f32 %v1618, %v1640
        %v1655 = vmul.f32 %v1619, %v1640
        %v1656 = vmul.f32 %v1620, %v1644
        %v1657 = vmul.f32 %v1621, %v1644
        %v1658 = vadd.f32 %v1537, %v1646
        %v1659 = vadd.f32 %v1538, %v1647
        %v1660 = vadd.f32 %v1539, %v1648
        %v1661 = vadd.f32 %v1540, %v1649
        %v1662 = vadd.f32 %v1541, %v1650
        %v1663 = vadd.f32 %v1542, %v1651
        %v1664 = vadd.f32 %v1543, %v1652
        %v1665 = vadd.f32 %v1544, %v1653
        %v1666 = vadd.f32 %v1545, %v1654
        %v1667 = vadd.f32 %v1546, %v1655
        %v1668 = vadd.f32 %v1547, %v1656
        %v1669 = vadd.f32 %v1548, %v1657
        %v1670 = vld [vmem:[%s4] sm:$0xff]
        %v1671 = vld [vmem:[%s4 + $0x8] sm:$0xff]
        %v1672 = vld [vmem:[%s4 + $0x10] sm:$0xff]
        %v1673 = vld [vmem:[%s4 + $0x18] sm:$0xff]
        %v1674 = vld [vmem:[%s4 + $0x20] sm:$0xff]
        %v1675 = vld [vmem:[%s4 + $0x28] sm:$0xff]
        %1677 = vset.pattern.permute.xlu0 0
        %1678 = vperm.xlu0 %1677, %v1670
        %v1679 = vpop.permute.xlu0 %1678
        %1682 = vset.pattern.permute.xlu0 0
        %1683 = vperm.xlu0 %1682, %v1671
        %v1684 = vpop.permute.xlu0 %1683
        %1687 = vset.pattern.permute.xlu0 0
        %1688 = vperm.xlu0 %1687, %v1672
        %v1689 = vpop.permute.xlu0 %1688
        %1692 = vset.pattern.permute.xlu0 0
        %1693 = vperm.xlu0 %1692, %v1673
        %v1694 = vpop.permute.xlu0 %1693
        %1697 = vset.pattern.permute.xlu0 0
        %1698 = vperm.xlu0 %1697, %v1674
        %v1699 = vpop.permute.xlu0 %1698
        %1702 = vset.pattern.permute.xlu0 0
        %1703 = vperm.xlu0 %1702, %v1675
        %v1704 = vpop.permute.xlu0 %1703
        %v1706 = vadd.f32 %v1658, %v1679
        %v1707 = vadd.f32 %v1659, %v1679
        %v1708 = vadd.f32 %v1660, %v1684
        %v1709 = vadd.f32 %v1661, %v1684
        %v1710 = vadd.f32 %v1662, %v1689
        %v1711 = vadd.f32 %v1663, %v1689
        %v1712 = vadd.f32 %v1664, %v1694
        %v1713 = vadd.f32 %v1665, %v1694
        %v1714 = vadd.f32 %v1666, %v1699
        %v1715 = vadd.f32 %v1667, %v1699
        %v1716 = vadd.f32 %v1668, %v1704
        %v1717 = vadd.f32 %v1669, %v1704
        %v1718 = vmul.f32 %v1706, %v1706
        %v1719 = vmul.f32 %v1707, %v1707
        %v1720 = vmul.f32 %v1708, %v1708
        %v1721 = vmul.f32 %v1709, %v1709
        %v1722 = vadd.f32 %v1718, %v1719
        %1723 = vadd.xlane.f32.xlu0 %v1722
        %v1724 = vpop.xlane.xlu0 %1723
        %v1725 = vadd.f32 %v1720, %v1721
        %1726 = vadd.xlane.f32.xlu0 %v1725
        %v1727 = vpop.xlane.xlu0 %1726
        %v1728 = vmax.f32 %v1724, 1e-24
        %v1729 = vmax.f32 %v1727, 1e-24
        %v1730 = vrsqrt.pop %v1728
        %v1731 = vrsqrt.pop %v1729
        %v1732 = vmul.f32 %v1706, %v1730
        %v1733 = vmul.f32 %v1707, %v1730
        %v1734 = vmul.f32 %v1708, %v1731
        %v1735 = vmul.f32 %v1709, %v1731
        %v1736 = vmul.f32 %v1710, %v1710
        %v1737 = vmul.f32 %v1711, %v1711
        %v1738 = vmul.f32 %v1712, %v1712
        %v1739 = vmul.f32 %v1713, %v1713
        %v1740 = vadd.f32 %v1736, %v1737
        %1741 = vadd.xlane.f32.xlu0 %v1740
        %v1742 = vpop.xlane.xlu0 %1741
        %v1743 = vadd.f32 %v1738, %v1739
        %1744 = vadd.xlane.f32.xlu0 %v1743
        %v1745 = vpop.xlane.xlu0 %1744
        %v1746 = vmax.f32 %v1742, 1e-24
        %v1747 = vmax.f32 %v1745, 1e-24
        %v1748 = vrsqrt.pop %v1746
        %v1749 = vrsqrt.pop %v1747
        %v1750 = vmul.f32 %v1710, %v1748
        %v1751 = vmul.f32 %v1711, %v1748
        %v1752 = vmul.f32 %v1712, %v1749
        %v1753 = vmul.f32 %v1713, %v1749
        %1754 = vmatprep.subr.mxu0 %v1751
        %1755 = vmatpush1.xpose.msra.mxu0 %v1750
        %1756 = vmatprep.subr.mxu0 0.0
        %1757 = vmatpush1.xpose.msra.mxu0 0.0
        %1758 = vmatprep.subr.mxu0 0.0
        %1759 = vmatpush1.xpose.msra.mxu0 0.0
        %1760 = vmatprep.subr.mxu0 0.0
        %1761 = vmatpush1.xpose.msra.mxu0 0.0
        %1762 = vmatprep.subr.mxu0 0.0
        %1763 = vmatpush1.xpose.msra.mxu0 0.0
        %1764 = vmatprep.subr.mxu0 0.0
        %1765 = vmatpush1.xpose.msra.mxu0 0.0
        %1766 = vmatprep.subr.mxu0 0.0
        %1767 = vmatpush1.xpose.msra.mxu0 0.0
        %1768 = vmatprep.subr.mxu0 0.0
        %1769 = vmatpush1.xpose.msra.mxu0 0.0
        %1770 = vmatprep.subr.mxu0 0.0
        %1771 = vmatpush1.xpose.msra.mxu0 0.0
        %1772 = vmatprep.subr.mxu0 0.0
        %1773 = vmatpush1.xpose.msra.mxu0 0.0
        %1774 = vmatprep.subr.mxu0 0.0
        %1775 = vmatpush1.xpose.msra.mxu0 0.0
        %1776 = vmatprep.subr.mxu0 0.0
        %1777 = vmatpush1.xpose.msra.mxu0 0.0
        %1778 = vmatprep.subr.mxu0 0.0
        %1779 = vmatpush1.xpose.msra.mxu0 0.0
        %1780 = vmatprep.subr.mxu0 0.0
        %1781 = vmatpush1.xpose.msra.mxu0 0.0
        %1782 = vmatprep.subr.mxu0 0.0
        %1783 = vmatpush1.xpose.msra.mxu0 0.0
        %1784 = vmatprep.subr.mxu0 0.0
        %1785 = vmatpush1.xpose.msra.mxu0 0.0
        %1786 = vmatprep.subr.mxu0 0.0
        %1787 = vmatpush1.xpose.msra.mxu0 0.0
        %1788 = vmatprep.subr.mxu0 0.0
        %1789 = vmatpush1.xpose.msra.mxu0 0.0
        %1790 = vmatprep.subr.mxu0 0.0
        %1791 = vmatpush1.xpose.msra.mxu0 0.0
        %1792 = vmatprep.subr.mxu0 0.0
        %1793 = vmatpush1.xpose.msra.mxu0 0.0
        %1794 = vmatprep.subr.mxu0 0.0
        %1795 = vmatpush1.xpose.msra.mxu0 0.0
        %1796 = vmatprep.subr.mxu0 0.0
        %1797 = vmatpush1.xpose.msra.mxu0 0.0
        %1798 = vmatprep.subr.mxu0 0.0
        %1799 = vmatpush1.xpose.msra.mxu0 0.0
        %1800 = vmatprep.subr.mxu0 0.0
        %1801 = vmatpush1.xpose.msra.mxu0 0.0
        %1802 = vmatprep.subr.mxu0 0.0
        %1803 = vmatpush1.xpose.msra.mxu0 0.0
        %1804 = vmatprep.subr.mxu0 0.0
        %1805 = vmatpush1.xpose.msra.mxu0 0.0
        %1806 = vmatprep.subr.mxu0 0.0
        %1807 = vmatpush1.xpose.msra.mxu0 0.0
        %1808 = vmatprep.subr.mxu0 0.0
        %1809 = vmatpush1.xpose.msra.mxu0 0.0
        %1810 = vmatprep.subr.mxu0 0.0
        %1811 = vmatpush1.xpose.msra.mxu0 0.0
        %1812 = vmatprep.subr.mxu0 0.0
        %1813 = vmatpush1.xpose.msra.mxu0 0.0
        %1814 = vmatprep.subr.mxu0 0.0
        %1815 = vmatpush1.xpose.msra.mxu0 0.0
        %1816 = vmatprep.subr.mxu0 0.0
        %1817 = vmatpush1.xpose.msra.mxu0 0.0
        %1818 = vmatprep.mubr.f32.mxu0 %v1733
        %1819 = vmatmul.mubr.f32.gmra.mrb[0].mxu0 %v1732
        %v1820 = vpop.f32.mrb[0].mxu0
        %v1821 = vadd.f32 0.0, %v1820
        %v1822 = vpop.f32.mrb[0].mxu0
        %1823 = vdwg.mxu0
        %s1824 = sld [smem:[#allocation3]]
        %v1825 = vstv %s1824
        %v1826 = vmul.f32 %v1821, %v1825
        %vm1827 = vcmask 27648
        %v1828 = vsel %vm1827, %v1826, -inf
        %1829 = vmax.xlane.f32.xlu0 %v1828
        %v1830 = vpop.xlane.xlu0 %1829
        %v1831 = vsub.f32 %v1826, %v1830
        %v1832 = vmul.f32 %v1831, 1.442695
        %v1833 = vpow.pop %v1832
        %v1834 = vsel %vm1827, %v1833, 0.0
        %1835 = vadd.xlane.f32.xlu0 %v1834
        %v1836 = vpop.xlane.xlu0 %1835
        %v1837 = vrcp.pop %v1836
        %v1838 = vmul.f32 %v1836, %v1837
        %v1839 = vsub.f32 2.0, %v1838
        %v1840 = vmul.f32 %v1837, %v1839
        %v1841 = vmul.f32 %v1833, %v1840
        %vm1842 = vcmask 31744
        %v1844 = vsel %vm1842, %v1841, 0
        %vm1846 = vcmask 1043456
        %v1848 = vsel %vm1846, %v1714, 0
        %v1851 = vsel %vm1846, %v1715, 0
        %1853 = vmatprep.subr.mxu0 %v1851
        %1854 = vmatpush1.msra.mxu0 %v1848
        %1855 = vmatprep.subr.mxu0 0.0
        %1856 = vmatpush1.msra.mxu0 0.0
        %1857 = vmatprep.subr.mxu0 0.0
        %1858 = vmatpush1.msra.mxu0 0.0
        %1859 = vmatprep.subr.mxu0 0.0
        %1860 = vmatpush1.msra.mxu0 0.0
        %1861 = vmatprep.subr.mxu0 0.0
        %1862 = vmatpush1.msra.mxu0 0.0
        %1863 = vmatprep.subr.mxu0 0.0
        %1864 = vmatpush1.msra.mxu0 0.0
        %1865 = vmatprep.subr.mxu0 0.0
        %1866 = vmatpush1.msra.mxu0 0.0
        %1867 = vmatprep.subr.mxu0 0.0
        %1868 = vmatpush1.msra.mxu0 0.0
        %1869 = vmatprep.subr.mxu0 0.0
        %1870 = vmatpush1.msra.mxu0 0.0
        %1871 = vmatprep.subr.mxu0 0.0
        %1872 = vmatpush1.msra.mxu0 0.0
        %1873 = vmatprep.subr.mxu0 0.0
        %1874 = vmatpush1.msra.mxu0 0.0
        %1875 = vmatprep.subr.mxu0 0.0
        %1876 = vmatpush1.msra.mxu0 0.0
        %1877 = vmatprep.subr.mxu0 0.0
        %1878 = vmatpush1.msra.mxu0 0.0
        %1879 = vmatprep.subr.mxu0 0.0
        %1880 = vmatpush1.msra.mxu0 0.0
        %1881 = vmatprep.subr.mxu0 0.0
        %1882 = vmatpush1.msra.mxu0 0.0
        %1883 = vmatprep.subr.mxu0 0.0
        %1884 = vmatpush1.msra.mxu0 0.0
        %1885 = vmatprep.subr.mxu0 0.0
        %1886 = vmatpush1.msra.mxu0 0.0
        %1887 = vmatprep.subr.mxu0 0.0
        %1888 = vmatpush1.msra.mxu0 0.0
        %1889 = vmatprep.subr.mxu0 0.0
        %1890 = vmatpush1.msra.mxu0 0.0
        %1891 = vmatprep.subr.mxu0 0.0
        %1892 = vmatpush1.msra.mxu0 0.0
        %1893 = vmatprep.subr.mxu0 0.0
        %1894 = vmatpush1.msra.mxu0 0.0
        %1895 = vmatprep.subr.mxu0 0.0
        %1896 = vmatpush1.msra.mxu0 0.0
        %1897 = vmatprep.subr.mxu0 0.0
        %1898 = vmatpush1.msra.mxu0 0.0
        %1899 = vmatprep.subr.mxu0 0.0
        %1900 = vmatpush1.msra.mxu0 0.0
        %1901 = vmatprep.subr.mxu0 0.0
        %1902 = vmatpush1.msra.mxu0 0.0
        %1903 = vmatprep.subr.mxu0 0.0
        %1904 = vmatpush1.msra.mxu0 0.0
        %1905 = vmatprep.subr.mxu0 0.0
        %1906 = vmatpush1.msra.mxu0 0.0
        %1907 = vmatprep.subr.mxu0 0.0
        %1908 = vmatpush1.msra.mxu0 0.0
        %1909 = vmatprep.subr.mxu0 0.0
        %1910 = vmatpush1.msra.mxu0 0.0
        %1911 = vmatprep.subr.mxu0 0.0
        %1912 = vmatpush1.msra.mxu0 0.0
        %1913 = vmatprep.subr.mxu0 0.0
        %1914 = vmatpush1.msra.mxu0 0.0
        %1915 = vmatprep.subr.mxu0 0.0
        %1916 = vmatpush1.msra.mxu0 0.0
        %1917 = vmatprep.mubr.f32.mxu0 0.0
        %1918 = vmatmul.mubr.f32.gmra.mrb[0].mxu0 %v1844
        %v1919 = vpop.f32.mrb[0].mxu0
        %v1920 = vadd.f32 0.0, %v1919
        %v1921 = vpop.f32.mrb[0].mxu0
        %v1922 = vadd.f32 0.0, %v1921
        %1923 = vdwg.mxu0
        %v1924 = vld [vmem:[%s6] sm:$0xff]
        %v1925 = vld [vmem:[%s6 + $0x8] sm:$0xff]
        %v1928 = vrot.slane %v1732, 4
        %v1929 = vrot.slane %v1733, 4
        %v1934 = vrot.slane %v1750, 4
        %v1935 = vrot.slane %v1751, 4
        %1938 = vmatprep.subr.mxu0 %v1935
        %1939 = vmatpush1.xpose.msra.mxu0 %v1934
        %1940 = vmatprep.subr.mxu0 0.0
        %1941 = vmatpush1.xpose.msra.mxu0 0.0
        %1942 = vmatprep.subr.mxu0 0.0
        %1943 = vmatpush1.xpose.msra.mxu0 0.0
        %1944 = vmatprep.subr.mxu0 0.0
        %1945 = vmatpush1.xpose.msra.mxu0 0.0
        %1946 = vmatprep.subr.mxu0 0.0
        %1947 = vmatpush1.xpose.msra.mxu0 0.0
        %1948 = vmatprep.subr.mxu0 0.0
        %1949 = vmatpush1.xpose.msra.mxu0 0.0
        %1950 = vmatprep.subr.mxu0 0.0
        %1951 = vmatpush1.xpose.msra.mxu0 0.0
        %1952 = vmatprep.subr.mxu0 0.0
        %1953 = vmatpush1.xpose.msra.mxu0 0.0
        %1954 = vmatprep.subr.mxu0 0.0
        %1955 = vmatpush1.xpose.msra.mxu0 0.0
        %1956 = vmatprep.subr.mxu0 0.0
        %1957 = vmatpush1.xpose.msra.mxu0 0.0
        %1958 = vmatprep.subr.mxu0 0.0
        %1959 = vmatpush1.xpose.msra.mxu0 0.0
        %1960 = vmatprep.subr.mxu0 0.0
        %1961 = vmatpush1.xpose.msra.mxu0 0.0
        %1962 = vmatprep.subr.mxu0 0.0
        %1963 = vmatpush1.xpose.msra.mxu0 0.0
        %1964 = vmatprep.subr.mxu0 0.0
        %1965 = vmatpush1.xpose.msra.mxu0 0.0
        %1966 = vmatprep.subr.mxu0 0.0
        %1967 = vmatpush1.xpose.msra.mxu0 0.0
        %1968 = vmatprep.subr.mxu0 0.0
        %1969 = vmatpush1.xpose.msra.mxu0 0.0
        %1970 = vmatprep.subr.mxu0 0.0
        %1971 = vmatpush1.xpose.msra.mxu0 0.0
        %1972 = vmatprep.subr.mxu0 0.0
        %1973 = vmatpush1.xpose.msra.mxu0 0.0
        %1974 = vmatprep.subr.mxu0 0.0
        %1975 = vmatpush1.xpose.msra.mxu0 0.0
        %1976 = vmatprep.subr.mxu0 0.0
        %1977 = vmatpush1.xpose.msra.mxu0 0.0
        %1978 = vmatprep.subr.mxu0 0.0
        %1979 = vmatpush1.xpose.msra.mxu0 0.0
        %1980 = vmatprep.subr.mxu0 0.0
        %1981 = vmatpush1.xpose.msra.mxu0 0.0
        %1982 = vmatprep.subr.mxu0 0.0
        %1983 = vmatpush1.xpose.msra.mxu0 0.0
        %1984 = vmatprep.subr.mxu0 0.0
        %1985 = vmatpush1.xpose.msra.mxu0 0.0
        %1986 = vmatprep.subr.mxu0 0.0
        %1987 = vmatpush1.xpose.msra.mxu0 0.0
        %1988 = vmatprep.subr.mxu0 0.0
        %1989 = vmatpush1.xpose.msra.mxu0 0.0
        %1990 = vmatprep.subr.mxu0 0.0
        %1991 = vmatpush1.xpose.msra.mxu0 0.0
        %1992 = vmatprep.subr.mxu0 0.0
        %1993 = vmatpush1.xpose.msra.mxu0 0.0
        %1994 = vmatprep.subr.mxu0 0.0
        %1995 = vmatpush1.xpose.msra.mxu0 0.0
        %1996 = vmatprep.subr.mxu0 0.0
        %1997 = vmatpush1.xpose.msra.mxu0 0.0
        %1998 = vmatprep.subr.mxu0 0.0
        %1999 = vmatpush1.xpose.msra.mxu0 0.0
        %2000 = vmatprep.subr.mxu0 0.0
        %2001 = vmatpush1.xpose.msra.mxu0 0.0
        %2002 = vmatprep.mubr.f32.mxu0 %v1929
        %2003 = vmatmul.mubr.f32.gmra.mrb[0].mxu0 %v1928
        %v2004 = vpop.f32.mrb[0].mxu0
        %v2005 = vadd.f32 0.0, %v2004
        %v2006 = vpop.f32.mrb[0].mxu0
        %2007 = vdwg.mxu0
        %s2008 = sld [smem:[#allocation3 + $0x1]]
        %v2009 = vstv %s2008
        %v2010 = vmul.f32 %v2005, %v2009
        %v2011 = vsel %vm1827, %v2010, -inf
        %2012 = vmax.xlane.f32.xlu0 %v2011
        %v2013 = vpop.xlane.xlu0 %2012
        %v2014 = vsub.f32 %v2010, %v2013
        %v2015 = vmul.f32 %v2014, 1.442695
        %v2016 = vpow.pop %v2015
        %v2017 = vsel %vm1827, %v2016, 0.0
        %2018 = vadd.xlane.f32.xlu0 %v2017
        %v2019 = vpop.xlane.xlu0 %2018
        %v2020 = vrcp.pop %v2019
        %v2021 = vmul.f32 %v2019, %v2020
        %v2022 = vsub.f32 2.0, %v2021
        %v2023 = vmul.f32 %v2020, %v2022
        %v2024 = vmul.f32 %v2016, %v2023
        %v2025 = vrot.slane %v1714, 4
        %v2026 = vrot.slane %v1715, 4
        %v2028 = vsel %vm1842, %v2024, 0
        %v2030 = vsel %vm1846, %v2025, 0
        %v2032 = vsel %vm1846, %v2026, 0
        %2034 = vmatprep.subr.mxu0 %v2032
        %2035 = vmatpush1.msra.mxu0 %v2030
        %2036 = vmatprep.subr.mxu0 0.0
        %2037 = vmatpush1.msra.mxu0 0.0
        %2038 = vmatprep.subr.mxu0 0.0
        %2039 = vmatpush1.msra.mxu0 0.0
        %2040 = vmatprep.subr.mxu0 0.0
        %2041 = vmatpush1.msra.mxu0 0.0
        %2042 = vmatprep.subr.mxu0 0.0
        %2043 = vmatpush1.msra.mxu0 0.0
        %2044 = vmatprep.subr.mxu0 0.0
        %2045 = vmatpush1.msra.mxu0 0.0
        %2046 = vmatprep.subr.mxu0 0.0
        %2047 = vmatpush1.msra.mxu0 0.0
        %2048 = vmatprep.subr.mxu0 0.0
        %2049 = vmatpush1.msra.mxu0 0.0
        %2050 = vmatprep.subr.mxu0 0.0
        %2051 = vmatpush1.msra.mxu0 0.0
        %2052 = vmatprep.subr.mxu0 0.0
        %2053 = vmatpush1.msra.mxu0 0.0
        %2054 = vmatprep.subr.mxu0 0.0
        %2055 = vmatpush1.msra.mxu0 0.0
        %2056 = vmatprep.subr.mxu0 0.0
        %2057 = vmatpush1.msra.mxu0 0.0
        %2058 = vmatprep.subr.mxu0 0.0
        %2059 = vmatpush1.msra.mxu0 0.0
        %2060 = vmatprep.subr.mxu0 0.0
        %2061 = vmatpush1.msra.mxu0 0.0
        %2062 = vmatprep.subr.mxu0 0.0
        %2063 = vmatpush1.msra.mxu0 0.0
        %2064 = vmatprep.subr.mxu0 0.0
        %2065 = vmatpush1.msra.mxu0 0.0
        %2066 = vmatprep.subr.mxu0 0.0
        %2067 = vmatpush1.msra.mxu0 0.0
        %2068 = vmatprep.subr.mxu0 0.0
        %2069 = vmatpush1.msra.mxu0 0.0
        %2070 = vmatprep.subr.mxu0 0.0
        %2071 = vmatpush1.msra.mxu0 0.0
        %2072 = vmatprep.subr.mxu0 0.0
        %2073 = vmatpush1.msra.mxu0 0.0
        %2074 = vmatprep.subr.mxu0 0.0
        %2075 = vmatpush1.msra.mxu0 0.0
        %2076 = vmatprep.subr.mxu0 0.0
        %2077 = vmatpush1.msra.mxu0 0.0
        %2078 = vmatprep.subr.mxu0 0.0
        %2079 = vmatpush1.msra.mxu0 0.0
        %2080 = vmatprep.subr.mxu0 0.0
        %2081 = vmatpush1.msra.mxu0 0.0
        %2082 = vmatprep.subr.mxu0 0.0
        %2083 = vmatpush1.msra.mxu0 0.0
        %2084 = vmatprep.subr.mxu0 0.0
        %2085 = vmatpush1.msra.mxu0 0.0
        %2086 = vmatprep.subr.mxu0 0.0
        %2087 = vmatpush1.msra.mxu0 0.0
        %2088 = vmatprep.subr.mxu0 0.0
        %2089 = vmatpush1.msra.mxu0 0.0
        %2090 = vmatprep.subr.mxu0 0.0
        %2091 = vmatpush1.msra.mxu0 0.0
        %2092 = vmatprep.subr.mxu0 0.0
        %2093 = vmatpush1.msra.mxu0 0.0
        %2094 = vmatprep.subr.mxu0 0.0
        %2095 = vmatpush1.msra.mxu0 0.0
        %2096 = vmatprep.subr.mxu0 0.0
        %2097 = vmatpush1.msra.mxu0 0.0
        %2098 = vmatprep.mubr.f32.mxu0 0.0
        %2099 = vmatmul.mubr.f32.gmra.mrb[0].mxu0 %v2028
        %v2100 = vpop.f32.mrb[0].mxu0
        %v2101 = vadd.f32 0.0, %v2100
        %v2102 = vpop.f32.mrb[0].mxu0
        %v2103 = vadd.f32 0.0, %v2102
        %2104 = vdwg.mxu0
        %2107 = vrot.lane.b32.xlu0 %v1924, 124
        %v2108 = vpop.permute.xlu0 %2107
        %2109 = vrot.lane.b32.xlu0 %v1925, 124
        %v2110 = vpop.permute.xlu0 %2109
        %v2111 = vsel %vm1842, %v2108, 0
        %v2113 = vsel %vm1842, %v2110, 0
        %v2116 = vsel %vm1846, %v2101, 0
        %v2119 = vsel %vm1846, %v2103, 0
        %2121 = vmatprep.subr.mxu0 %v2119
        %2122 = vmatpush1.msra.mxu0 %v2116
        %2123 = vmatprep.subr.mxu0 0.0
        %2124 = vmatpush1.msra.mxu0 0.0
        %2125 = vmatprep.subr.mxu0 0.0
        %2126 = vmatpush1.msra.mxu0 0.0
        %2127 = vmatprep.subr.mxu0 0.0
        %2128 = vmatpush1.msra.mxu0 0.0
        %2129 = vmatprep.subr.mxu0 0.0
        %2130 = vmatpush1.msra.mxu0 0.0
        %2131 = vmatprep.subr.mxu0 0.0
        %2132 = vmatpush1.msra.mxu0 0.0
        %2133 = vmatprep.subr.mxu0 0.0
        %2134 = vmatpush1.msra.mxu0 0.0
        %2135 = vmatprep.subr.mxu0 0.0
        %2136 = vmatpush1.msra.mxu0 0.0
        %2137 = vmatprep.subr.mxu0 0.0
        %2138 = vmatpush1.msra.mxu0 0.0
        %2139 = vmatprep.subr.mxu0 0.0
        %2140 = vmatpush1.msra.mxu0 0.0
        %2141 = vmatprep.subr.mxu0 0.0
        %2142 = vmatpush1.msra.mxu0 0.0
        %2143 = vmatprep.subr.mxu0 0.0
        %2144 = vmatpush1.msra.mxu0 0.0
        %2145 = vmatprep.subr.mxu0 0.0
        %2146 = vmatpush1.msra.mxu0 0.0
        %2147 = vmatprep.subr.mxu0 0.0
        %2148 = vmatpush1.msra.mxu0 0.0
        %2149 = vmatprep.subr.mxu0 0.0
        %2150 = vmatpush1.msra.mxu0 0.0
        %2151 = vmatprep.subr.mxu0 0.0
        %2152 = vmatpush1.msra.mxu0 0.0
        %2153 = vmatprep.subr.mxu0 0.0
        %2154 = vmatpush1.msra.mxu0 0.0
        %2155 = vmatprep.subr.mxu0 0.0
        %2156 = vmatpush1.msra.mxu0 0.0
        %2157 = vmatprep.subr.mxu0 0.0
        %2158 = vmatpush1.msra.mxu0 0.0
        %2159 = vmatprep.subr.mxu0 0.0
        %2160 = vmatpush1.msra.mxu0 0.0
        %2161 = vmatprep.subr.mxu0 0.0
        %2162 = vmatpush1.msra.mxu0 0.0
        %2163 = vmatprep.subr.mxu0 0.0
        %2164 = vmatpush1.msra.mxu0 0.0
        %2165 = vmatprep.subr.mxu0 0.0
        %2166 = vmatpush1.msra.mxu0 0.0
        %2167 = vmatprep.subr.mxu0 0.0
        %2168 = vmatpush1.msra.mxu0 0.0
        %2169 = vmatprep.subr.mxu0 0.0
        %2170 = vmatpush1.msra.mxu0 0.0
        %2171 = vmatprep.subr.mxu0 0.0
        %2172 = vmatpush1.msra.mxu0 0.0
        %2173 = vmatprep.subr.mxu0 0.0
        %2174 = vmatpush1.msra.mxu0 0.0
        %2175 = vmatprep.subr.mxu0 0.0
        %2176 = vmatpush1.msra.mxu0 0.0
        %2177 = vmatprep.subr.mxu0 0.0
        %2178 = vmatpush1.msra.mxu0 0.0
        %2179 = vmatprep.subr.mxu0 0.0
        %2180 = vmatpush1.msra.mxu0 0.0
        %2181 = vmatprep.subr.mxu0 0.0
        %2182 = vmatpush1.msra.mxu0 0.0
        %2183 = vmatprep.subr.mxu0 0.0
        %2184 = vmatpush1.msra.mxu0 0.0
        %2185 = vmatprep.mubr.f32.mxu0 0.0
        %2186 = vmatmul.mubr.f32.gmra.mrb[0].mxu0 %v2111
        %v2187 = vpop.f32.mrb[0].mxu0
        %v2188 = vadd.f32 0.0, %v2187
        %v2189 = vpop.f32.mrb[0].mxu0
        %v2190 = vadd.f32 0.0, %v2189
        %2191 = vmatprep.mubr.f32.mxu0 0.0
        %2192 = vmatmul.mubr.f32.gmra.mrb[0].mxu0 %v2113
        %v2193 = vpop.f32.mrb[0].mxu0
        %v2194 = vadd.f32 0.0, %v2193
        %v2195 = vpop.f32.mrb[0].mxu0
        %v2196 = vadd.f32 0.0, %v2195
        %2197 = vdwg.mxu0
        %v2198 = vsel %vm1842, %v1924, 0
        %v2200 = vsel %vm1842, %v1925, 0
        %v2203 = vsel %vm1846, %v1920, 0
        %v2206 = vsel %vm1846, %v1922, 0
        %2208 = vmatprep.subr.mxu0 %v2206
        %2209 = vmatpush1.msra.mxu0 %v2203
        %2210 = vmatprep.subr.mxu0 0.0
        %2211 = vmatpush1.msra.mxu0 0.0
        %2212 = vmatprep.subr.mxu0 0.0
        %2213 = vmatpush1.msra.mxu0 0.0
        %2214 = vmatprep.subr.mxu0 0.0
        %2215 = vmatpush1.msra.mxu0 0.0
        %2216 = vmatprep.subr.mxu0 0.0
        %2217 = vmatpush1.msra.mxu0 0.0
        %2218 = vmatprep.subr.mxu0 0.0
        %2219 = vmatpush1.msra.mxu0 0.0
        %2220 = vmatprep.subr.mxu0 0.0
        %2221 = vmatpush1.msra.mxu0 0.0
        %2222 = vmatprep.subr.mxu0 0.0
        %2223 = vmatpush1.msra.mxu0 0.0
        %2224 = vmatprep.subr.mxu0 0.0
        %2225 = vmatpush1.msra.mxu0 0.0
        %2226 = vmatprep.subr.mxu0 0.0
        %2227 = vmatpush1.msra.mxu0 0.0
        %2228 = vmatprep.subr.mxu0 0.0
        %2229 = vmatpush1.msra.mxu0 0.0
        %2230 = vmatprep.subr.mxu0 0.0
        %2231 = vmatpush1.msra.mxu0 0.0
        %2232 = vmatprep.subr.mxu0 0.0
        %2233 = vmatpush1.msra.mxu0 0.0
        %2234 = vmatprep.subr.mxu0 0.0
        %2235 = vmatpush1.msra.mxu0 0.0
        %2236 = vmatprep.subr.mxu0 0.0
        %2237 = vmatpush1.msra.mxu0 0.0
        %2238 = vmatprep.subr.mxu0 0.0
        %2239 = vmatpush1.msra.mxu0 0.0
        %2240 = vmatprep.subr.mxu0 0.0
        %2241 = vmatpush1.msra.mxu0 0.0
        %2242 = vmatprep.subr.mxu0 0.0
        %2243 = vmatpush1.msra.mxu0 0.0
        %2244 = vmatprep.subr.mxu0 0.0
        %2245 = vmatpush1.msra.mxu0 0.0
        %2246 = vmatprep.subr.mxu0 0.0
        %2247 = vmatpush1.msra.mxu0 0.0
        %2248 = vmatprep.subr.mxu0 0.0
        %2249 = vmatpush1.msra.mxu0 0.0
        %2250 = vmatprep.subr.mxu0 0.0
        %2251 = vmatpush1.msra.mxu0 0.0
        %2252 = vmatprep.subr.mxu0 0.0
        %2253 = vmatpush1.msra.mxu0 0.0
        %2254 = vmatprep.subr.mxu0 0.0
        %2255 = vmatpush1.msra.mxu0 0.0
        %2256 = vmatprep.subr.mxu0 0.0
        %2257 = vmatpush1.msra.mxu0 0.0
        %2258 = vmatprep.subr.mxu0 0.0
        %2259 = vmatpush1.msra.mxu0 0.0
        %2260 = vmatprep.subr.mxu0 0.0
        %2261 = vmatpush1.msra.mxu0 0.0
        %2262 = vmatprep.subr.mxu0 0.0
        %2263 = vmatpush1.msra.mxu0 0.0
        %2264 = vmatprep.subr.mxu0 0.0
        %2265 = vmatpush1.msra.mxu0 0.0
        %2266 = vmatprep.subr.mxu0 0.0
        %2267 = vmatpush1.msra.mxu0 0.0
        %2268 = vmatprep.subr.mxu0 0.0
        %2269 = vmatpush1.msra.mxu0 0.0
        %2270 = vmatprep.subr.mxu0 0.0
        %2271 = vmatpush1.msra.mxu0 0.0
        %2272 = vmatprep.mubr.f32.mxu0 0.0
        %2273 = vmatmul.mubr.f32.gmra.mrb[0].mxu0 %v2198
        %v2274 = vpop.f32.mrb[0].mxu0
        %v2275 = vadd.f32 %v2188, %v2274
        %v2276 = vpop.f32.mrb[0].mxu0
        %v2277 = vadd.f32 %v2190, %v2276
        %2278 = vmatprep.mubr.f32.mxu0 0.0
        %2279 = vmatmul.mubr.f32.gmra.mrb[0].mxu0 %v2200
        %v2280 = vpop.f32.mrb[0].mxu0
        %v2281 = vadd.f32 %v2194, %v2280
        %v2282 = vpop.f32.mrb[0].mxu0
        %v2283 = vadd.f32 %v2196, %v2282
        %2284 = vdwg.mxu0
        %2285 = vmatprep.subr.mxu0 %v1753
        %2286 = vmatpush1.xpose.msra.mxu0 %v1752
        %2287 = vmatprep.subr.mxu0 0.0
        %2288 = vmatpush1.xpose.msra.mxu0 0.0
        %2289 = vmatprep.subr.mxu0 0.0
        %2290 = vmatpush1.xpose.msra.mxu0 0.0
        %2291 = vmatprep.subr.mxu0 0.0
        %2292 = vmatpush1.xpose.msra.mxu0 0.0
        %2293 = vmatprep.subr.mxu0 0.0
        %2294 = vmatpush1.xpose.msra.mxu0 0.0
        %2295 = vmatprep.subr.mxu0 0.0
        %2296 = vmatpush1.xpose.msra.mxu0 0.0
        %2297 = vmatprep.subr.mxu0 0.0
        %2298 = vmatpush1.xpose.msra.mxu0 0.0
        %2299 = vmatprep.subr.mxu0 0.0
        %2300 = vmatpush1.xpose.msra.mxu0 0.0
        %2301 = vmatprep.subr.mxu0 0.0
        %2302 = vmatpush1.xpose.msra.mxu0 0.0
        %2303 = vmatprep.subr.mxu0 0.0
        %2304 = vmatpush1.xpose.msra.mxu0 0.0
        %2305 = vmatprep.subr.mxu0 0.0
        %2306 = vmatpush1.xpose.msra.mxu0 0.0
        %2307 = vmatprep.subr.mxu0 0.0
        %2308 = vmatpush1.xpose.msra.mxu0 0.0
        %2309 = vmatprep.subr.mxu0 0.0
        %2310 = vmatpush1.xpose.msra.mxu0 0.0
        %2311 = vmatprep.subr.mxu0 0.0
        %2312 = vmatpush1.xpose.msra.mxu0 0.0
        %2313 = vmatprep.subr.mxu0 0.0
        %2314 = vmatpush1.xpose.msra.mxu0 0.0
        %2315 = vmatprep.subr.mxu0 0.0
        %2316 = vmatpush1.xpose.msra.mxu0 0.0
        %2317 = vmatprep.subr.mxu0 0.0
        %2318 = vmatpush1.xpose.msra.mxu0 0.0
        %2319 = vmatprep.subr.mxu0 0.0
        %2320 = vmatpush1.xpose.msra.mxu0 0.0
        %2321 = vmatprep.subr.mxu0 0.0
        %2322 = vmatpush1.xpose.msra.mxu0 0.0
        %2323 = vmatprep.subr.mxu0 0.0
        %2324 = vmatpush1.xpose.msra.mxu0 0.0
        %2325 = vmatprep.subr.mxu0 0.0
        %2326 = vmatpush1.xpose.msra.mxu0 0.0
        %2327 = vmatprep.subr.mxu0 0.0
        %2328 = vmatpush1.xpose.msra.mxu0 0.0
        %2329 = vmatprep.subr.mxu0 0.0
        %2330 = vmatpush1.xpose.msra.mxu0 0.0
        %2331 = vmatprep.subr.mxu0 0.0
        %2332 = vmatpush1.xpose.msra.mxu0 0.0
        %2333 = vmatprep.subr.mxu0 0.0
        %2334 = vmatpush1.xpose.msra.mxu0 0.0
        %2335 = vmatprep.subr.mxu0 0.0
        %2336 = vmatpush1.xpose.msra.mxu0 0.0
        %2337 = vmatprep.subr.mxu0 0.0
        %2338 = vmatpush1.xpose.msra.mxu0 0.0
        %2339 = vmatprep.subr.mxu0 0.0
        %2340 = vmatpush1.xpose.msra.mxu0 0.0
        %2341 = vmatprep.subr.mxu0 0.0
        %2342 = vmatpush1.xpose.msra.mxu0 0.0
        %2343 = vmatprep.subr.mxu0 0.0
        %2344 = vmatpush1.xpose.msra.mxu0 0.0
        %2345 = vmatprep.subr.mxu0 0.0
        %2346 = vmatpush1.xpose.msra.mxu0 0.0
        %2347 = vmatprep.subr.mxu0 0.0
        %2348 = vmatpush1.xpose.msra.mxu0 0.0
        %2349 = vmatprep.mubr.f32.mxu0 %v1735
        %2350 = vmatmul.mubr.f32.gmra.mrb[0].mxu0 %v1734
        %v2351 = vpop.f32.mrb[0].mxu0
        %v2352 = vadd.f32 0.0, %v2351
        %v2353 = vpop.f32.mrb[0].mxu0
        %2354 = vdwg.mxu0
        %s2355 = sld [smem:[#allocation3 + $0x2]]
        %v2356 = vstv %s2355
        %v2357 = vmul.f32 %v2352, %v2356
        %v2358 = vsel %vm1827, %v2357, -inf
        %2359 = vmax.xlane.f32.xlu0 %v2358
        %v2360 = vpop.xlane.xlu0 %2359
        %v2361 = vsub.f32 %v2357, %v2360
        %v2362 = vmul.f32 %v2361, 1.442695
        %v2363 = vpow.pop %v2362
        %v2364 = vsel %vm1827, %v2363, 0.0
        %2365 = vadd.xlane.f32.xlu0 %v2364
        %v2366 = vpop.xlane.xlu0 %2365
        %v2367 = vrcp.pop %v2366
        %v2368 = vmul.f32 %v2366, %v2367
        %v2369 = vsub.f32 2.0, %v2368
        %v2370 = vmul.f32 %v2367, %v2369
        %v2371 = vmul.f32 %v2363, %v2370
        %v2373 = vsel %vm1842, %v2371, 0
        %v2376 = vsel %vm1846, %v1716, 0
        %v2379 = vsel %vm1846, %v1717, 0
        %2381 = vmatprep.subr.mxu0 %v2379
        %2382 = vmatpush1.msra.mxu0 %v2376
        %2383 = vmatprep.subr.mxu0 0.0
        %2384 = vmatpush1.msra.mxu0 0.0
        %2385 = vmatprep.subr.mxu0 0.0
        %2386 = vmatpush1.msra.mxu0 0.0
        %2387 = vmatprep.subr.mxu0 0.0
        %2388 = vmatpush1.msra.mxu0 0.0
        %2389 = vmatprep.subr.mxu0 0.0
        %2390 = vmatpush1.msra.mxu0 0.0
        %2391 = vmatprep.subr.mxu0 0.0
        %2392 = vmatpush1.msra.mxu0 0.0
        %2393 = vmatprep.subr.mxu0 0.0
        %2394 = vmatpush1.msra.mxu0 0.0
        %2395 = vmatprep.subr.mxu0 0.0
        %2396 = vmatpush1.msra.mxu0 0.0
        %2397 = vmatprep.subr.mxu0 0.0
        %2398 = vmatpush1.msra.mxu0 0.0
        %2399 = vmatprep.subr.mxu0 0.0
        %2400 = vmatpush1.msra.mxu0 0.0
        %2401 = vmatprep.subr.mxu0 0.0
        %2402 = vmatpush1.msra.mxu0 0.0
        %2403 = vmatprep.subr.mxu0 0.0
        %2404 = vmatpush1.msra.mxu0 0.0
        %2405 = vmatprep.subr.mxu0 0.0
        %2406 = vmatpush1.msra.mxu0 0.0
        %2407 = vmatprep.subr.mxu0 0.0
        %2408 = vmatpush1.msra.mxu0 0.0
        %2409 = vmatprep.subr.mxu0 0.0
        %2410 = vmatpush1.msra.mxu0 0.0
        %2411 = vmatprep.subr.mxu0 0.0
        %2412 = vmatpush1.msra.mxu0 0.0
        %2413 = vmatprep.subr.mxu0 0.0
        %2414 = vmatpush1.msra.mxu0 0.0
        %2415 = vmatprep.subr.mxu0 0.0
        %2416 = vmatpush1.msra.mxu0 0.0
        %2417 = vmatprep.subr.mxu0 0.0
        %2418 = vmatpush1.msra.mxu0 0.0
        %2419 = vmatprep.subr.mxu0 0.0
        %2420 = vmatpush1.msra.mxu0 0.0
        %2421 = vmatprep.subr.mxu0 0.0
        %2422 = vmatpush1.msra.mxu0 0.0
        %2423 = vmatprep.subr.mxu0 0.0
        %2424 = vmatpush1.msra.mxu0 0.0
        %2425 = vmatprep.subr.mxu0 0.0
        %2426 = vmatpush1.msra.mxu0 0.0
        %2427 = vmatprep.subr.mxu0 0.0
        %2428 = vmatpush1.msra.mxu0 0.0
        %2429 = vmatprep.subr.mxu0 0.0
        %2430 = vmatpush1.msra.mxu0 0.0
        %2431 = vmatprep.subr.mxu0 0.0
        %2432 = vmatpush1.msra.mxu0 0.0
        %2433 = vmatprep.subr.mxu0 0.0
        %2434 = vmatpush1.msra.mxu0 0.0
        %2435 = vmatprep.subr.mxu0 0.0
        %2436 = vmatpush1.msra.mxu0 0.0
        %2437 = vmatprep.subr.mxu0 0.0
        %2438 = vmatpush1.msra.mxu0 0.0
        %2439 = vmatprep.subr.mxu0 0.0
        %2440 = vmatpush1.msra.mxu0 0.0
        %2441 = vmatprep.subr.mxu0 0.0
        %2442 = vmatpush1.msra.mxu0 0.0
        %2443 = vmatprep.subr.mxu0 0.0
        %2444 = vmatpush1.msra.mxu0 0.0
        %2445 = vmatprep.mubr.f32.mxu0 0.0
        %2446 = vmatmul.mubr.f32.gmra.mrb[0].mxu0 %v2373
        %v2447 = vpop.f32.mrb[0].mxu0
        %v2448 = vadd.f32 0.0, %v2447
        %v2449 = vpop.f32.mrb[0].mxu0
        %v2450 = vadd.f32 0.0, %v2449
        %2451 = vdwg.mxu0
        %2452 = vrot.lane.b32.xlu0 %v1924, 120
        %v2453 = vpop.permute.xlu0 %2452
        %2454 = vrot.lane.b32.xlu0 %v1925, 120
        %v2455 = vpop.permute.xlu0 %2454
        %v2456 = vsel %vm1842, %v2453, 0
        %v2458 = vsel %vm1842, %v2455, 0
        %v2461 = vsel %vm1846, %v2448, 0
        %v2464 = vsel %vm1846, %v2450, 0
        %2466 = vmatprep.subr.mxu0 %v2464
        %2467 = vmatpush1.msra.mxu0 %v2461
        %2468 = vmatprep.subr.mxu0 0.0
        %2469 = vmatpush1.msra.mxu0 0.0
        %2470 = vmatprep.subr.mxu0 0.0
        %2471 = vmatpush1.msra.mxu0 0.0
        %2472 = vmatprep.subr.mxu0 0.0
        %2473 = vmatpush1.msra.mxu0 0.0
        %2474 = vmatprep.subr.mxu0 0.0
        %2475 = vmatpush1.msra.mxu0 0.0
        %2476 = vmatprep.subr.mxu0 0.0
        %2477 = vmatpush1.msra.mxu0 0.0
        %2478 = vmatprep.subr.mxu0 0.0
        %2479 = vmatpush1.msra.mxu0 0.0
        %2480 = vmatprep.subr.mxu0 0.0
        %2481 = vmatpush1.msra.mxu0 0.0
        %2482 = vmatprep.subr.mxu0 0.0
        %2483 = vmatpush1.msra.mxu0 0.0
        %2484 = vmatprep.subr.mxu0 0.0
        %2485 = vmatpush1.msra.mxu0 0.0
        %2486 = vmatprep.subr.mxu0 0.0
        %2487 = vmatpush1.msra.mxu0 0.0
        %2488 = vmatprep.subr.mxu0 0.0
        %2489 = vmatpush1.msra.mxu0 0.0
        %2490 = vmatprep.subr.mxu0 0.0
        %2491 = vmatpush1.msra.mxu0 0.0
        %2492 = vmatprep.subr.mxu0 0.0
        %2493 = vmatpush1.msra.mxu0 0.0
        %2494 = vmatprep.subr.mxu0 0.0
        %2495 = vmatpush1.msra.mxu0 0.0
        %2496 = vmatprep.subr.mxu0 0.0
        %2497 = vmatpush1.msra.mxu0 0.0
        %2498 = vmatprep.subr.mxu0 0.0
        %2499 = vmatpush1.msra.mxu0 0.0
        %2500 = vmatprep.subr.mxu0 0.0
        %2501 = vmatpush1.msra.mxu0 0.0
        %2502 = vmatprep.subr.mxu0 0.0
        %2503 = vmatpush1.msra.mxu0 0.0
        %2504 = vmatprep.subr.mxu0 0.0
        %2505 = vmatpush1.msra.mxu0 0.0
        %2506 = vmatprep.subr.mxu0 0.0
        %2507 = vmatpush1.msra.mxu0 0.0
        %2508 = vmatprep.subr.mxu0 0.0
        %2509 = vmatpush1.msra.mxu0 0.0
        %2510 = vmatprep.subr.mxu0 0.0
        %2511 = vmatpush1.msra.mxu0 0.0
        %2512 = vmatprep.subr.mxu0 0.0
        %2513 = vmatpush1.msra.mxu0 0.0
        %2514 = vmatprep.subr.mxu0 0.0
        %2515 = vmatpush1.msra.mxu0 0.0
        %2516 = vmatprep.subr.mxu0 0.0
        %2517 = vmatpush1.msra.mxu0 0.0
        %2518 = vmatprep.subr.mxu0 0.0
        %2519 = vmatpush1.msra.mxu0 0.0
        %2520 = vmatprep.subr.mxu0 0.0
        %2521 = vmatpush1.msra.mxu0 0.0
        %2522 = vmatprep.subr.mxu0 0.0
        %2523 = vmatpush1.msra.mxu0 0.0
        %2524 = vmatprep.subr.mxu0 0.0
        %2525 = vmatpush1.msra.mxu0 0.0
        %2526 = vmatprep.subr.mxu0 0.0
        %2527 = vmatpush1.msra.mxu0 0.0
        %2528 = vmatprep.subr.mxu0 0.0
        %2529 = vmatpush1.msra.mxu0 0.0
        %2530 = vmatprep.mubr.f32.mxu0 0.0
        %2531 = vmatmul.mubr.f32.gmra.mrb[0].mxu0 %v2456
        %v2532 = vpop.f32.mrb[0].mxu0
        %v2533 = vadd.f32 0.0, %v2532
        %v2534 = vpop.f32.mrb[0].mxu0
        %v2535 = vadd.f32 0.0, %v2534
        %2536 = vmatprep.mubr.f32.mxu0 0.0
        %2537 = vmatmul.mubr.f32.gmra.mrb[0].mxu0 %v2458
        %v2538 = vpop.f32.mrb[0].mxu0
        %v2539 = vadd.f32 0.0, %v2538
        %v2540 = vpop.f32.mrb[0].mxu0
        %v2541 = vadd.f32 0.0, %v2540
        %2542 = vdwg.mxu0
        %v2543 = vadd.f32 %v2275, %v2533
        %v2544 = vadd.f32 %v2277, %v2535
        %v2545 = vadd.f32 %v2281, %v2539
        %v2546 = vadd.f32 %v2283, %v2541
        %v2549 = vrot.slane %v1734, 4
        %v2550 = vrot.slane %v1735, 4
        %v2555 = vrot.slane %v1752, 4
        %v2556 = vrot.slane %v1753, 4
        %2559 = vmatprep.subr.mxu0 %v2556
        %2560 = vmatpush1.xpose.msra.mxu0 %v2555
        %2561 = vmatprep.subr.mxu0 0.0
        %2562 = vmatpush1.xpose.msra.mxu0 0.0
        %2563 = vmatprep.subr.mxu0 0.0
        %2564 = vmatpush1.xpose.msra.mxu0 0.0
        %2565 = vmatprep.subr.mxu0 0.0
        %2566 = vmatpush1.xpose.msra.mxu0 0.0
        %2567 = vmatprep.subr.mxu0 0.0
        %2568 = vmatpush1.xpose.msra.mxu0 0.0
        %2569 = vmatprep.subr.mxu0 0.0
        %2570 = vmatpush1.xpose.msra.mxu0 0.0
        %2571 = vmatprep.subr.mxu0 0.0
        %2572 = vmatpush1.xpose.msra.mxu0 0.0
        %2573 = vmatprep.subr.mxu0 0.0
        %2574 = vmatpush1.xpose.msra.mxu0 0.0
        %2575 = vmatprep.subr.mxu0 0.0
        %2576 = vmatpush1.xpose.msra.mxu0 0.0
        %2577 = vmatprep.subr.mxu0 0.0
        %2578 = vmatpush1.xpose.msra.mxu0 0.0
        %2579 = vmatprep.subr.mxu0 0.0
        %2580 = vmatpush1.xpose.msra.mxu0 0.0
        %2581 = vmatprep.subr.mxu0 0.0
        %2582 = vmatpush1.xpose.msra.mxu0 0.0
        %2583 = vmatprep.subr.mxu0 0.0
        %2584 = vmatpush1.xpose.msra.mxu0 0.0
        %2585 = vmatprep.subr.mxu0 0.0
        %2586 = vmatpush1.xpose.msra.mxu0 0.0
        %2587 = vmatprep.subr.mxu0 0.0
        %2588 = vmatpush1.xpose.msra.mxu0 0.0
        %2589 = vmatprep.subr.mxu0 0.0
        %2590 = vmatpush1.xpose.msra.mxu0 0.0
        %2591 = vmatprep.subr.mxu0 0.0
        %2592 = vmatpush1.xpose.msra.mxu0 0.0
        %2593 = vmatprep.subr.mxu0 0.0
        %2594 = vmatpush1.xpose.msra.mxu0 0.0
        %2595 = vmatprep.subr.mxu0 0.0
        %2596 = vmatpush1.xpose.msra.mxu0 0.0
        %2597 = vmatprep.subr.mxu0 0.0
        %2598 = vmatpush1.xpose.msra.mxu0 0.0
        %2599 = vmatprep.subr.mxu0 0.0
        %2600 = vmatpush1.xpose.msra.mxu0 0.0
        %2601 = vmatprep.subr.mxu0 0.0
        %2602 = vmatpush1.xpose.msra.mxu0 0.0
        %2603 = vmatprep.subr.mxu0 0.0
        %2604 = vmatpush1.xpose.msra.mxu0 0.0
        %2605 = vmatprep.subr.mxu0 0.0
        %2606 = vmatpush1.xpose.msra.mxu0 0.0
        %2607 = vmatprep.subr.mxu0 0.0
        %2608 = vmatpush1.xpose.msra.mxu0 0.0
        %2609 = vmatprep.subr.mxu0 0.0
        %2610 = vmatpush1.xpose.msra.mxu0 0.0
        %2611 = vmatprep.subr.mxu0 0.0
        %2612 = vmatpush1.xpose.msra.mxu0 0.0
        %2613 = vmatprep.subr.mxu0 0.0
        %2614 = vmatpush1.xpose.msra.mxu0 0.0
        %2615 = vmatprep.subr.mxu0 0.0
        %2616 = vmatpush1.xpose.msra.mxu0 0.0
        %2617 = vmatprep.subr.mxu0 0.0
        %2618 = vmatpush1.xpose.msra.mxu0 0.0
        %2619 = vmatprep.subr.mxu0 0.0
        %2620 = vmatpush1.xpose.msra.mxu0 0.0
        %2621 = vmatprep.subr.mxu0 0.0
        %2622 = vmatpush1.xpose.msra.mxu0 0.0
        %2623 = vmatprep.mubr.f32.mxu0 %v2550
        %2624 = vmatmul.mubr.f32.gmra.mrb[0].mxu0 %v2549
        %v2625 = vpop.f32.mrb[0].mxu0
        %v2626 = vadd.f32 0.0, %v2625
        %v2627 = vpop.f32.mrb[0].mxu0
        %2628 = vdwg.mxu0
        %s2629 = sld [smem:[#allocation3 + $0x3]]
        %v2630 = vstv %s2629
        %v2631 = vmul.f32 %v2626, %v2630
        %v2632 = vsel %vm1827, %v2631, -inf
        %2633 = vmax.xlane.f32.xlu0 %v2632
        %v2634 = vpop.xlane.xlu0 %2633
        %v2635 = vsub.f32 %v2631, %v2634
        %v2636 = vmul.f32 %v2635, 1.442695
        %v2637 = vpow.pop %v2636
        %v2638 = vsel %vm1827, %v2637, 0.0
        %2639 = vadd.xlane.f32.xlu0 %v2638
        %v2640 = vpop.xlane.xlu0 %2639
        %v2641 = vrcp.pop %v2640
        %v2642 = vmul.f32 %v2640, %v2641
        %v2643 = vsub.f32 2.0, %v2642
        %v2644 = vmul.f32 %v2641, %v2643
        %v2645 = vmul.f32 %v2637, %v2644
        %v2646 = vrot.slane %v1716, 4
        %v2647 = vrot.slane %v1717, 4
        %v2649 = vsel %vm1842, %v2645, 0
        %v2651 = vsel %vm1846, %v2646, 0
        %v2653 = vsel %vm1846, %v2647, 0
        %2655 = vmatprep.subr.mxu0 %v2653
        %2656 = vmatpush1.msra.mxu0 %v2651
        %2657 = vmatprep.subr.mxu0 0.0
        %2658 = vmatpush1.msra.mxu0 0.0
        %2659 = vmatprep.subr.mxu0 0.0
        %2660 = vmatpush1.msra.mxu0 0.0
        %2661 = vmatprep.subr.mxu0 0.0
        %2662 = vmatpush1.msra.mxu0 0.0
        %2663 = vmatprep.subr.mxu0 0.0
        %2664 = vmatpush1.msra.mxu0 0.0
        %2665 = vmatprep.subr.mxu0 0.0
        %2666 = vmatpush1.msra.mxu0 0.0
        %2667 = vmatprep.subr.mxu0 0.0
        %2668 = vmatpush1.msra.mxu0 0.0
        %2669 = vmatprep.subr.mxu0 0.0
        %2670 = vmatpush1.msra.mxu0 0.0
        %2671 = vmatprep.subr.mxu0 0.0
        %2672 = vmatpush1.msra.mxu0 0.0
        %2673 = vmatprep.subr.mxu0 0.0
        %2674 = vmatpush1.msra.mxu0 0.0
        %2675 = vmatprep.subr.mxu0 0.0
        %2676 = vmatpush1.msra.mxu0 0.0
        %2677 = vmatprep.subr.mxu0 0.0
        %2678 = vmatpush1.msra.mxu0 0.0
        %2679 = vmatprep.subr.mxu0 0.0
        %2680 = vmatpush1.msra.mxu0 0.0
        %2681 = vmatprep.subr.mxu0 0.0
        %2682 = vmatpush1.msra.mxu0 0.0
        %2683 = vmatprep.subr.mxu0 0.0
        %2684 = vmatpush1.msra.mxu0 0.0
        %2685 = vmatprep.subr.mxu0 0.0
        %2686 = vmatpush1.msra.mxu0 0.0
        %2687 = vmatprep.subr.mxu0 0.0
        %2688 = vmatpush1.msra.mxu0 0.0
        %2689 = vmatprep.subr.mxu0 0.0
        %2690 = vmatpush1.msra.mxu0 0.0
        %2691 = vmatprep.subr.mxu0 0.0
        %2692 = vmatpush1.msra.mxu0 0.0
        %2693 = vmatprep.subr.mxu0 0.0
        %2694 = vmatpush1.msra.mxu0 0.0
        %2695 = vmatprep.subr.mxu0 0.0
        %2696 = vmatpush1.msra.mxu0 0.0
        %2697 = vmatprep.subr.mxu0 0.0
        %2698 = vmatpush1.msra.mxu0 0.0
        %2699 = vmatprep.subr.mxu0 0.0
        %2700 = vmatpush1.msra.mxu0 0.0
        %2701 = vmatprep.subr.mxu0 0.0
        %2702 = vmatpush1.msra.mxu0 0.0
        %2703 = vmatprep.subr.mxu0 0.0
        %2704 = vmatpush1.msra.mxu0 0.0
        %2705 = vmatprep.subr.mxu0 0.0
        %2706 = vmatpush1.msra.mxu0 0.0
        %2707 = vmatprep.subr.mxu0 0.0
        %2708 = vmatpush1.msra.mxu0 0.0
        %2709 = vmatprep.subr.mxu0 0.0
        %2710 = vmatpush1.msra.mxu0 0.0
        %2711 = vmatprep.subr.mxu0 0.0
        %2712 = vmatpush1.msra.mxu0 0.0
        %2713 = vmatprep.subr.mxu0 0.0
        %2714 = vmatpush1.msra.mxu0 0.0
        %2715 = vmatprep.subr.mxu0 0.0
        %2716 = vmatpush1.msra.mxu0 0.0
        %2717 = vmatprep.subr.mxu0 0.0
        %2718 = vmatpush1.msra.mxu0 0.0
        %2719 = vmatprep.mubr.f32.mxu0 0.0
        %2720 = vmatmul.mubr.f32.gmra.mrb[0].mxu0 %v2649
        %v2721 = vpop.f32.mrb[0].mxu0
        %v2722 = vadd.f32 0.0, %v2721
        %v2723 = vpop.f32.mrb[0].mxu0
        %v2724 = vadd.f32 0.0, %v2723
        %2725 = vdwg.mxu0
        %2726 = vrot.lane.b32.xlu0 %v1924, 116
        %v2727 = vpop.permute.xlu0 %2726
        %2728 = vrot.lane.b32.xlu0 %v1925, 116
        %v2729 = vpop.permute.xlu0 %2728
        %v2730 = vsel %vm1842, %v2727, 0
        %v2732 = vsel %vm1842, %v2729, 0
        %v2735 = vsel %vm1846, %v2722, 0
        %v2738 = vsel %vm1846, %v2724, 0
        %2740 = vmatprep.subr.mxu0 %v2738
        %2741 = vmatpush1.msra.mxu0 %v2735
        %2742 = vmatprep.subr.mxu0 0.0
        %2743 = vmatpush1.msra.mxu0 0.0
        %2744 = vmatprep.subr.mxu0 0.0
        %2745 = vmatpush1.msra.mxu0 0.0
        %2746 = vmatprep.subr.mxu0 0.0
        %2747 = vmatpush1.msra.mxu0 0.0
        %2748 = vmatprep.subr.mxu0 0.0
        %2749 = vmatpush1.msra.mxu0 0.0
        %2750 = vmatprep.subr.mxu0 0.0
        %2751 = vmatpush1.msra.mxu0 0.0
        %2752 = vmatprep.subr.mxu0 0.0
        %2753 = vmatpush1.msra.mxu0 0.0
        %2754 = vmatprep.subr.mxu0 0.0
        %2755 = vmatpush1.msra.mxu0 0.0
        %2756 = vmatprep.subr.mxu0 0.0
        %2757 = vmatpush1.msra.mxu0 0.0
        %2758 = vmatprep.subr.mxu0 0.0
        %2759 = vmatpush1.msra.mxu0 0.0
        %2760 = vmatprep.subr.mxu0 0.0
        %2761 = vmatpush1.msra.mxu0 0.0
        %2762 = vmatprep.subr.mxu0 0.0
        %2763 = vmatpush1.msra.mxu0 0.0
        %2764 = vmatprep.subr.mxu0 0.0
        %2765 = vmatpush1.msra.mxu0 0.0
        %2766 = vmatprep.subr.mxu0 0.0
        %2767 = vmatpush1.msra.mxu0 0.0
        %2768 = vmatprep.subr.mxu0 0.0
        %2769 = vmatpush1.msra.mxu0 0.0
        %2770 = vmatprep.subr.mxu0 0.0
        %2771 = vmatpush1.msra.mxu0 0.0
        %2772 = vmatprep.subr.mxu0 0.0
        %2773 = vmatpush1.msra.mxu0 0.0
        %2774 = vmatprep.subr.mxu0 0.0
        %2775 = vmatpush1.msra.mxu0 0.0
        %2776 = vmatprep.subr.mxu0 0.0
        %2777 = vmatpush1.msra.mxu0 0.0
        %2778 = vmatprep.subr.mxu0 0.0
        %2779 = vmatpush1.msra.mxu0 0.0
        %2780 = vmatprep.subr.mxu0 0.0
        %2781 = vmatpush1.msra.mxu0 0.0
        %2782 = vmatprep.subr.mxu0 0.0
        %2783 = vmatpush1.msra.mxu0 0.0
        %2784 = vmatprep.subr.mxu0 0.0
        %2785 = vmatpush1.msra.mxu0 0.0
        %2786 = vmatprep.subr.mxu0 0.0
        %2787 = vmatpush1.msra.mxu0 0.0
        %2788 = vmatprep.subr.mxu0 0.0
        %2789 = vmatpush1.msra.mxu0 0.0
        %2790 = vmatprep.subr.mxu0 0.0
        %2791 = vmatpush1.msra.mxu0 0.0
        %2792 = vmatprep.subr.mxu0 0.0
        %2793 = vmatpush1.msra.mxu0 0.0
        %2794 = vmatprep.subr.mxu0 0.0
        %2795 = vmatpush1.msra.mxu0 0.0
        %2796 = vmatprep.subr.mxu0 0.0
        %2797 = vmatpush1.msra.mxu0 0.0
        %2798 = vmatprep.subr.mxu0 0.0
        %2799 = vmatpush1.msra.mxu0 0.0
        %2800 = vmatprep.subr.mxu0 0.0
        %2801 = vmatpush1.msra.mxu0 0.0
        %2802 = vmatprep.subr.mxu0 0.0
        %2803 = vmatpush1.msra.mxu0 0.0
        %2804 = vmatprep.mubr.f32.mxu0 0.0
        %2805 = vmatmul.mubr.f32.gmra.mrb[0].mxu0 %v2730
        %v2806 = vpop.f32.mrb[0].mxu0
        %v2807 = vadd.f32 0.0, %v2806
        %v2808 = vpop.f32.mrb[0].mxu0
        %v2809 = vadd.f32 0.0, %v2808
        %2810 = vmatprep.mubr.f32.mxu0 0.0
        %2811 = vmatmul.mubr.f32.gmra.mrb[0].mxu0 %v2732
        %v2812 = vpop.f32.mrb[0].mxu0
        %v2813 = vadd.f32 0.0, %v2812
        %v2814 = vpop.f32.mrb[0].mxu0
        %v2815 = vadd.f32 0.0, %v2814
        %2816 = vdwg.mxu0
        %v2817 = vadd.f32 %v2543, %v2807
        %v2818 = vadd.f32 %v2544, %v2809
        %v2819 = vadd.f32 %v2545, %v2813
        %v2820 = vadd.f32 %v2546, %v2815
        %v2821 = vld [vmem:[%s7] sm:$0xff]
        %v2822 = vld [vmem:[%s7 + $0x8] sm:$0xff]
        %2824 = vset.pattern.permute.xlu0 0
        %2825 = vperm.xlu0 %2824, %v2821
        %v2826 = vpop.permute.xlu0 %2825
        %2829 = vset.pattern.permute.xlu0 0
        %2830 = vperm.xlu0 %2829, %v2822
        %v2831 = vpop.permute.xlu0 %2830
        %v2833 = vadd.f32 %v2817, %v2826
        %v2834 = vadd.f32 %v2818, %v2826
        %v2835 = vadd.f32 %v2819, %v2831
        %v2836 = vadd.f32 %v2820, %v2831
        %2837 = vst [vmem:[%s312] sm:$0xff] %v2833
        %2838 = vst [vmem:[%s312 + $0x8] sm:$0xff] %v2834
        %2839 = vst [vmem:[%s312 + $0x10] sm:$0xff] %v2835
        %2840 = vst [vmem:[%s312 + $0x18] sm:$0xff] %v2836
        %s2841 = sand.u32 %s204, 1
        %s2842 = scalar_lea.sflag [#allocation4], %s2841
        %s2843 = sand.u32 %s204, 1
        %s2844 = smul.addr %s2843, 32
        %s2845 = scalar_lea.vmem [#allocation6], %s2844
        // Predicated region
        $region57: #{tpu_custom_call.1} parent=51 // pred_check
          %p2846 = pneg %p214
        $region58: #{tpu_custom_call.1} parent=51 // pred_check_branch
          %2848 = sbr.rel (%p2846) target = $region60
        $region59: #{tpu_custom_call.1} parent=51 // pred_region
          %s2850 = ssub.s32 512, 512
          %2851 = vsyncadd %s2842, %s2850
          %s2852 = smul.addr %s23, 4
          %s2853 = smul.addr %s2852, 128
          %s2854 = scalar_lea.hbm %s8, %s2853
          %s2855 = sshll.u32 %s2845, 4
          %s2856 = int_to_ptr.vmem [resolvable:$true] %s2855
          %2861 = dma.vmem_to_hbm [thread:$0]  %s2856, 512, %s2854, %s2842, 256, 256, 16
        $region60: #{tpu_custom_call.1} parent=51 // pred_fallthru
          _
      $region52: #{tpu_custom_call.1} parent=5 // pred_fallthru
        _
      %p2862 = scmp.le.s32.totalorder 2, %s18
      // Predicated region
      $region61: #{tpu_custom_call.1} parent=5 // pred_check
        %p2863 = pneg %p2862
      $region62: #{tpu_custom_call.1} parent=5 // pred_check_branch
        %2865 = sbr.rel (%p2863) target = $region64
      $region63: #{tpu_custom_call.1} parent=5 // pred_region
        %s2866 = ssub.s32 %s18, 2
        // Predicated region
        $region65: #{tpu_custom_call.1} parent=63 // pred_check
          %p2867 = pneg %p220
        $region66: #{tpu_custom_call.1} parent=63 // pred_check_branch
          %2869 = sbr.rel (%p2867) target = $region68
        $region67: #{tpu_custom_call.1} parent=63 // pred_region
          %s2870 = sand.u32 %s205, 1
          %s2871 = scalar_lea.sflag [#allocation4], %s2870
          %s2872 = sand.u32 %s205, 1
          %s2873 = smul.addr %s2872, 32
          %s2874 = scalar_lea.vmem [#allocation6], %s2873
          %2875 = dma.done %s2871, 512
        $region68: #{tpu_custom_call.1} parent=63 // pred_fallthru
          _
      $region64: #{tpu_custom_call.1} parent=5 // pred_fallthru
        _
    $region6: #{tpu_custom_call.1} parent=1 // loop_footer
      %s22 = sadd.s32 1, %s18
    $region7: #{tpu_custom_call.1} parent=1 // loop_footer_branch
      %17 = sbr.rel target = $region3
    $region8: #{tpu_custom_call.1} parent=1 // loop_exit
      _
    %2876 = vsyncpa [#allocation4], 1
    %s2877 = scalar_lea.sflag [#allocation4], 1
    %2878 = vsyncpa %s2877, 1
    %2879 = vsyncpa [#allocation5], 1
    %s2880 = scalar_lea.sflag [#allocation5], 1
    %2881 = vsyncpa %s2880, 1

</llo_original>
